<compile_context>
chip_gen: v6e
topology: v6e:2x2x1
jax: 0.10.0
libtpu: 0.0.40
codegen_flags: <defaults>
</compile_context>

<pallas_src>
import jax
import jax.numpy as jnp
from jax.experimental import pallas as pl
from jax.experimental.pallas import tpu as pltpu

BN_EPS = 1e-5


def regress_kernel(x_ref, w1_ref, b1_ref, w2_ref, b2_ref, out_ref, acc_ref):
    k = pl.program_id(0)

    @pl.when(k == 0)
    def _():
        acc_ref[...] = jnp.zeros_like(acc_ref)

    # Average pool over the spatial axis (the 1/(H*W) scale is folded into w1).
    # x tile: (N, HW, tk) bf16, lane-dense along the channel chunk.
    pooled = jnp.sum(x_ref[...].astype(jnp.float32), axis=1)        # (N, tk) f32
    pooled = pooled.astype(jnp.bfloat16)

    # Partial first matmul for this channel chunk (BN folded into w1/b1).
    acc_ref[...] += jnp.dot(pooled, w1_ref[...],
                            preferred_element_type=jnp.float32)      # (N, mid)

    @pl.when(k == pl.num_programs(0) - 1)
    def _():
        h = jnp.maximum(acc_ref[...] + b1_ref[...], 0.0)             # bias + ReLU
        # Dropout: identity in eval mode.
        out_ref[...] = (jnp.dot(h, w2_ref[...],
                                preferred_element_type=jnp.float32)
                        + b2_ref[...]).astype(out_ref.dtype)


def regress_net(x, params, *, tk=512):
    """x: (N, C, H, W) float32, C=2048, H=W=8. Returns (N, 3*joint_num) f32."""
    w1, b1, gamma, beta, mean, var, w2, b2 = params
    N, C, H, W = x.shape
    hw = H * W
    mid = w1.shape[1]
    out_dim = w2.shape[1]
    assert C % tk == 0

    # Fold eval-mode BatchNorm and the average-pool scale into w1/b1.
    s = gamma * jax.lax.rsqrt(var + BN_EPS)                 # (1, mid)
    w1_folded = (w1 * (1.0 / hw)) * s                       # (C, mid)
    b1_folded = (b1 - mean) * s + beta                      # (1, mid)

    # Lane-dense layout: channels on the lane axis; dominant streams in bf16.
    x_bf = x.reshape(N, C, hw).transpose(0, 2, 1).astype(jnp.bfloat16)  # (N, HW, C)
    w1_bf = w1_folded.astype(jnp.bfloat16)

    grid = (C // tk,)

    return pl.pallas_call(
        regress_kernel,
        out_shape=jax.ShapeDtypeStruct((N, out_dim), jnp.float32),
        grid_spec=pltpu.PrefetchScalarGridSpec(
            num_scalar_prefetch=0,
            grid=grid,
            in_specs=[
                pl.BlockSpec((N, hw, tk), lambda k: (0, 0, k)),    # x chunk (bf16)
                pl.BlockSpec((tk, mid), lambda k: (k, 0)),         # w1 chunk (bf16)
                pl.BlockSpec((1, mid), lambda k: (0, 0)),          # folded bias1
                pl.BlockSpec((mid, out_dim), lambda k: (0, 0)),    # w2 (f32)
                pl.BlockSpec((1, out_dim), lambda k: (0, 0)),      # b2
            ],
            out_specs=pl.BlockSpec((N, out_dim), lambda k: (0, 0)),
            scratch_shapes=[pltpu.VMEM((N, mid), jnp.float32)],    # accumulator
        ),
        compiler_params=pltpu.CompilerParams(
            dimension_semantics=("arbitrary",),                    # reduction axis
            vmem_limit_bytes=32 << 20,
        ),
    )(x_bf, w1_bf, b1_folded, w2, b2)


def init_params(key, joint_num):
    inplanes, midplanes = 2048, 1024
    outplanes = 3 * joint_num
    k1, k2, k3, k4 = jax.random.split(key, 4)

    # kaiming_normal_ (fan_in, leaky_relu a=0): std = sqrt(2 / fan_in)
    w1 = jax.random.normal(k1, (inplanes, midplanes), jnp.float32) * jnp.sqrt(2.0 / inplanes)
    w2 = jax.random.normal(k2, (midplanes, outplanes), jnp.float32) * jnp.sqrt(2.0 / midplanes)
    # nn.Linear default bias init: U(-1/sqrt(fan_in), 1/sqrt(fan_in))
    b1 = jax.random.uniform(k3, (1, midplanes), jnp.float32,
                            -1.0 / jnp.sqrt(inplanes), 1.0 / jnp.sqrt(inplanes))
    b2 = jax.random.uniform(k4, (1, outplanes), jnp.float32,
                            -1.0 / jnp.sqrt(midplanes), 1.0 / jnp.sqrt(midplanes))
    # BatchNorm1d defaults
    gamma = jnp.ones((1, midplanes), jnp.float32)
    beta = jnp.zeros((1, midplanes), jnp.float32)
    mean = jnp.zeros((1, midplanes), jnp.float32)
    var = jnp.ones((1, midplanes), jnp.float32)
    return (w1, b1, gamma, beta, mean, var, w2, b2)


def reference(x, params):
    """Pure-f32 JAX reference of the eval-mode forward pass."""
    w1, b1, gamma, beta, mean, var, w2, b2 = params
    pooled = jnp.mean(x.reshape(x.shape[0], x.shape[1], -1), axis=-1)
    h = pooled @ w1 + b1
    h = (h - mean) * jax.lax.rsqrt(var + BN_EPS) * gamma + beta
    h = jnp.maximum(h, 0.0)
    return h @ w2 + b2


if __name__ == "__main__":
    joint_num = 17                       # outplanes = 51
    N, C, H, W = 2, 2048, 8, 8           # AvgPool2d(8) + inplanes=2048 imply (N,2048,8,8)

    key = jax.random.PRNGKey(0)
    kx, kp = jax.random.split(key)
    x = jax.random.normal(kx, (N, C, H, W), jnp.float32)
    params = init_params(kp, joint_num)

    out = regress_net(x, params)
    out = jax.block_until_ready(out)

    ref = reference(x, params)
    assert out.shape == (N, 3 * joint_num)
    # bf16 weight/activation streams -> loosened tolerance vs f32 reference.
    assert jnp.allclose(out, ref, rtol=2e-2, atol=2e-2), "mismatch vs JAX reference"

    print("KERNEL_OK")
</pallas_src>

<mosaic_0001>
module attributes {stable_mosaic.version = 11 : i64} {
  func.func @regress_kernel(%arg0: i32, %arg1: memref<2x64x512xbf16, #tpu.memory_space<vmem>>, %arg2: memref<512x1024xbf16, #tpu.memory_space<vmem>>, %arg3: memref<1x1024xf32, #tpu.memory_space<vmem>>, %arg4: memref<1024x51xf32, #tpu.memory_space<vmem>>, %arg5: memref<1x51xf32, #tpu.memory_space<vmem>>, %arg6: memref<2x51xf32, #tpu.memory_space<vmem>>, %arg7: memref<2x1024xf32, #tpu.memory_space<vmem>>) attributes {dimension_semantics = [#tpu.dimension_semantics<arbitrary>], iteration_bounds = array<i64: 4>, scalar_prefetch = 0 : i64, scratch_operands = 1 : i64, tpu.core_type = #tpu.core_type<tc>, window_params = [{transform_indices = @transform_0, window_bounds = array<i64: 2, 64, 512>}, {transform_indices = @transform_1, window_bounds = array<i64: 512, 1024>}, {pipeline_mode = #tpu.pipeline_mode<synchronous>, transform_indices = @transform_2, window_bounds = array<i64: 1, 1024>}, {pipeline_mode = #tpu.pipeline_mode<synchronous>, transform_indices = @transform_3, window_bounds = array<i64: 1024, 51>}, {pipeline_mode = #tpu.pipeline_mode<synchronous>, transform_indices = @transform_4, window_bounds = array<i64: 1, 51>}, {pipeline_mode = #tpu.pipeline_mode<synchronous>, transform_indices = @transform_5, window_bounds = array<i64: 2, 51>}]} {
    %c0_i32 = arith.constant 0 : i32
    %0 = arith.cmpi eq, %arg0, %c0_i32 : i32
    %1 = arith.extui %0 : i1 to i32
    %c0_i32_0 = arith.constant 0 : i32
    %2 = arith.cmpi ne, %1, %c0_i32_0 : i32
    scf.if %2 {
      %cst_11 = arith.constant 0.000000e+00 : f32
      %15 = vector.broadcast %cst_11 : f32 to vector<2x1024xf32>
      %c0_12 = arith.constant 0 : index
      %c0_13 = arith.constant 0 : index
      %16 = vector.load %arg7[%c0_12, %c0_13] : memref<2x1024xf32, #tpu.memory_space<vmem>>, vector<2x1024xf32>
      tpu.vector_store %arg7[%c0_12, %c0_13], %15 {strides = array<i32>} : memref<2x1024xf32, #tpu.memory_space<vmem>>, vector<2x1024xf32>,
    } else {
    }
    %c0 = arith.constant 0 : index
    %c0_1 = arith.constant 0 : index
    %c0_2 = arith.constant 0 : index
    %3 = vector.load %arg1[%c0, %c0_1, %c0_2] : memref<2x64x512xbf16, #tpu.memory_space<vmem>>, vector<2x64x512xbf16>
    %4 = arith.extf %3 : vector<2x64x512xbf16> to vector<2x64x512xf32>
    %cst = arith.constant dense<0.000000e+00> : vector<2x512xf32>
    %5 = vector.multi_reduction <add>, %4, %cst [1] : vector<2x64x512xf32> to vector<2x512xf32>
    %6 = arith.truncf %5 : vector<2x512xf32> to vector<2x512xbf16>
    %c0_3 = arith.constant 0 : index
    %c0_4 = arith.constant 0 : index
    %7 = vector.load %arg7[%c0_3, %c0_4] : memref<2x1024xf32, #tpu.memory_space<vmem>>, vector<2x1024xf32>
    %c0_5 = arith.constant 0 : index
    %c0_6 = arith.constant 0 : index
    %8 = vector.load %arg2[%c0_5, %c0_6] : memref<512x1024xbf16, #tpu.memory_space<vmem>>, vector<512x1024xbf16>
    %cst_7 = arith.constant dense<0.000000e+00> : vector<2x1024xf32>
    %9 = tpu.matmul %6, %8, %cst_7 {dimension_numbers = #tpu.dot_dimension_numbers<[1], [0], [0], [1], [0, 0, 1, 1], [], []>} : vector<2x512xbf16>, vector<512x1024xbf16>, vector<2x1024xf32> -> vector<2x1024xf32>
    %10 = arith.addf %7, %9 : vector<2x1024xf32>
    %c0_8 = arith.constant 0 : index
    %c0_9 = arith.constant 0 : index
    %11 = vector.load %arg7[%c0_8, %c0_9] : memref<2x1024xf32, #tpu.memory_space<vmem>>, vector<2x1024xf32>
    tpu.vector_store %arg7[%c0_8, %c0_9], %10 {strides = array<i32>} : memref<2x1024xf32, #tpu.memory_space<vmem>>, vector<2x1024xf32>,
    %c3_i32 = arith.constant 3 : i32
    %12 = arith.cmpi eq, %arg0, %c3_i32 : i32
    %13 = arith.extui %12 : i1 to i32
    %c0_i32_10 = arith.constant 0 : i32
    %14 = arith.cmpi ne, %13, %c0_i32_10 : i32
    scf.if %14 {
      %c0_11 = arith.constant 0 : index
      %c0_12 = arith.constant 0 : index
      %15 = vector.load %arg7[%c0_11, %c0_12] : memref<2x1024xf32, #tpu.memory_space<vmem>>, vector<2x1024xf32>
      %c0_13 = arith.constant 0 : index
      %c0_14 = arith.constant 0 : index
      %16 = vector.load %arg3[%c0_13, %c0_14] : memref<1x1024xf32, #tpu.memory_space<vmem>>, vector<1x1024xf32>
      %17 = vector.broadcast %16 : vector<1x1024xf32> to vector<2x1024xf32>
      %18 = arith.addf %15, %17 : vector<2x1024xf32>
      %cst_15 = arith.constant 0.000000e+00 : f32
      %19 = vector.broadcast %cst_15 : f32 to vector<2x1024xf32>
      %20 = arith.maximumf %18, %19 : vector<2x1024xf32>
      %c0_16 = arith.constant 0 : index
      %c0_17 = arith.constant 0 : index
      %21 = vector.load %arg4[%c0_16, %c0_17] : memref<1024x51xf32, #tpu.memory_space<vmem>>, vector<1024x51xf32>
      %cst_18 = arith.constant dense<0.000000e+00> : vector<2x51xf32>
      %22 = tpu.matmul %20, %21, %cst_18 {dimension_numbers = #tpu.dot_dimension_numbers<[1], [0], [0], [1], [0, 0, 1, 1], [], []>} : vector<2x1024xf32>, vector<1024x51xf32>, vector<2x51xf32> -> vector<2x51xf32>
      %c0_19 = arith.constant 0 : index
      %c0_20 = arith.constant 0 : index
      %23 = vector.load %arg5[%c0_19, %c0_20] : memref<1x51xf32, #tpu.memory_space<vmem>>, vector<1x51xf32>
      %24 = vector.broadcast %23 : vector<1x51xf32> to vector<2x51xf32>
      %25 = arith.addf %22, %24 : vector<2x51xf32>
      %c0_21 = arith.constant 0 : index
      %c0_22 = arith.constant 0 : index
      %26 = vector.load %arg6[%c0_21, %c0_22] : memref<2x51xf32, #tpu.memory_space<vmem>>, vector<2x51xf32>
      tpu.vector_store %arg6[%c0_21, %c0_22], %25 {strides = array<i32>} : memref<2x51xf32, #tpu.memory_space<vmem>>, vector<2x51xf32>,
    } else {
    }
    return
  }
  func.func @transform_0(%arg0: i32) -> (i32, i32, i32) {
    %c0_i32 = arith.constant 0 : i32
    %c0_i32_0 = arith.constant 0 : i32
    %c0_i32_1 = arith.constant 0 : i32
    return %c0_i32, %c0_i32_0, %arg0 : i32, i32, i32
  }
  func.func @transform_1(%arg0: i32) -> (i32, i32) {
    %c0_i32 = arith.constant 0 : i32
    %c0_i32_0 = arith.constant 0 : i32
    return %arg0, %c0_i32 : i32, i32
  }
  func.func @transform_2(%arg0: i32) -> (i32, i32) {
    %c0_i32 = arith.constant 0 : i32
    %c0_i32_0 = arith.constant 0 : i32
    %c0_i32_1 = arith.constant 0 : i32
    return %c0_i32, %c0_i32_0 : i32, i32
  }
  func.func @transform_3(%arg0: i32) -> (i32, i32) {
    %c0_i32 = arith.constant 0 : i32
    %c0_i32_0 = arith.constant 0 : i32
    %c0_i32_1 = arith.constant 0 : i32
    return %c0_i32, %c0_i32_0 : i32, i32
  }
  func.func @transform_4(%arg0: i32) -> (i32, i32) {
    %c0_i32 = arith.constant 0 : i32
    %c0_i32_0 = arith.constant 0 : i32
    %c0_i32_1 = arith.constant 0 : i32
    return %c0_i32, %c0_i32_0 : i32, i32
  }
  func.func @transform_5(%arg0: i32) -> (i32, i32) {
    %c0_i32 = arith.constant 0 : i32
    %c0_i32_0 = arith.constant 0 : i32
    %c0_i32_1 = arith.constant 0 : i32
    return %c0_i32, %c0_i32_0 : i32, i32
  }
}

</mosaic_0001>

<llo_original>
// kernel: tpu_custom_call.1
$region0: #{tpu_custom_call.1}
  #allocation0 [shape = 'u32[]', space=smem, size = 0x4, offset = 0x4, fixed_abs, tag = 'smem constant byte address 0x4 - core index']
  #allocation1 [shape = 'u32[144,128]{1,0:T(1,128)}', space=vmem, size = 0x12000, scoped, tag = 'internal scratch']
  #allocation2 [shape = 'f32[2,1024]{1,0:T(2,128)}', space=vmem, size = 0x2000, scoped, tag = 'scratch operand']
  %s0 = inlined_call_operand.hbm [shape: bf16[2,64,2048], index: 0, kind: input, shape index: {}]
  %s1 = inlined_call_operand.hbm [shape: bf16[2048,1024], index: 1, kind: input, shape index: {}]
  %s2 = inlined_call_operand.hbm [shape: f32[1,1024], index: 2, kind: input, shape index: {}]
  %s3 = inlined_call_operand.vmem [shape: f32[1024,51], index: 3, kind: input, shape index: {}]
  %s4 = inlined_call_operand.hbm [shape: f32[1,51], index: 4, kind: input, shape index: {}]
  %s5 = inlined_call_operand.hbm [shape: f32[2,51], index: 5, kind: output, shape index: {}]
  %s6 = sld [smem:[#allocation0]]
  $region77: #{tpu_custom_call.1} parent=0
    _
  %s8 = ssub.s32 1, %s6
  %s9 = scalar_select 0, %s8, %s6
  $region1: #{tpu_custom_call.1} parent=0
    #allocation3 [shape = 'u8[262144]{0}', space=vmem, size = 0x40000, scoped, tag = 'input window, operand 0']
    #allocation4 [shape = 's32[2]{0}', space=sflag, size = 0x8, scoped, tag = 'scoped memory for tpu_custom_call.1']
    #allocation5 [shape = 's32[2]{0}', space=sflag, size = 0x8, scoped, tag = 'scoped memory for tpu_custom_call.1']
    #allocation6 [shape = 'u8[2097152]{0}', space=vmem, size = 0x200000, scoped, tag = 'input window, operand 1']
    #allocation7 [shape = 's32[2]{0}', space=sflag, size = 0x8, scoped, tag = 'scoped memory for tpu_custom_call.1']
    #allocation8 [shape = 'u8[4096]{0}', space=vmem, size = 0x1000, scoped, tag = 'input window, operand 2, single buffered']
    #allocation9 [shape = 'u8[512]{0}', space=vmem, size = 0x400, scoped, tag = 'input window, operand 4, single buffered']
    #allocation10 [shape = 's32[1]{0}', space=sflag, size = 0x4, scoped, tag = 'scoped memory for tpu_custom_call.1']
    #allocation11 [shape = 'u8[1024]{0}', space=vmem, size = 0x400, scoped, tag = 'output window, operand 0, single buffered']
    %10 = vsyncpa [#allocation4], 0
    %s11 = scalar_lea.sflag [#allocation4], 1
    %12 = vsyncpa %s11, 0
    %13 = vsyncpa [#allocation7], 0
    %s14 = scalar_lea.sflag [#allocation7], 1
    %15 = vsyncpa %s14, 0
    %16 = vsyncpa [#allocation10], 0
    %17 = vsyncpa [#allocation5], 0
    loop: start=0, step=1, limit=6
    $region2: #{tpu_custom_call.1} parent=1 // loop_pre_header
      _
    $region3: #{tpu_custom_call.1} parent=1 // loop_header
      %s19 = sphi 0, %s23
      %p20 = scmp.ge.s32.totalorder %s19, 6
      %s29 = sphi 0, %s31
      %s32 = sphi 0, %s29
      %s33 = sphi 0, %s32
      %s49 = sphi 0, %s33
      %s55 = sphi 0, %s57
      %s58 = sphi 0, %s55
      %s59 = sphi 0, %s58
      %s75 = sphi 0, %s59
      %s79 = sphi 0, %s79
      %s81 = sphi 0, %s79
      %s82 = sphi 0, %s81
      %s96 = sphi 0, %s82
      %s100 = sphi 0, %s100
      %s102 = sphi 0, %s100
      %s103 = sphi 0, %s102
      %s117 = sphi 0, %s103
      %s121 = sphi 0, %s121
      %s123 = sphi 0, %s121
      %s124 = sphi 0, %s123
      %s138 = sphi 0, %s124
      %s142 = sphi 0, %s142
      %s144 = sphi 0, %s142
      %s145 = sphi 0, %s144
      %s159 = sphi 0, %s145
    $region4: #{tpu_custom_call.1} parent=1 // loop_header_branch
      %22 = sbr.rel (%p20) target = $region8
    $region5: #{tpu_custom_call.1} parent=1 // loop_body
      %s24 = ssub.s32 %s19, 1
      %s25 = ssub.s32 %s19, 2
      %s26 = sadd.s32 %s19, 1
      %s27 = ssub.s32 %s19, %s26
      %p28 = scmp.eq.s32.totalorder %s27, 0
      %s30 = sadd.s32 %s29, 1
      %s31 = scalar_select %p28, %s29, %s30
      %p34 = pneg %p28
      %p35 = scmp.eq.s32.totalorder %s19, 3
      %p36 = por %p34, %p35
      %p37 = scmp.ne.s32.totalorder %s29, %s32
      %p38 = scmp.eq.s32.totalorder %s19, 0
      %p39 = por %p37, %p38
      %p40 = scmp.ne.s32.totalorder %s29, %s32
      %p41 = scmp.eq.s32.totalorder %s24, 3
      %p42 = por %p40, %p41
      %p43 = scmp.ne.s32.totalorder %s32, %s33
      %p44 = scmp.eq.s32.totalorder %s24, 0
      %p45 = por %p43, %p44
      %p46 = scmp.ne.s32.totalorder %s32, %s33
      %p47 = scmp.eq.s32.totalorder %s25, 3
      %p48 = por %p46, %p47
      %p50 = scmp.ne.s32.totalorder %s33, %s49
      %p51 = scmp.eq.s32.totalorder %s25, 0
      %p52 = por %p50, %p51
      %s53 = ssub.s32 %s19, %s26
      %p54 = scmp.eq.s32.totalorder %s53, 0
      %s56 = sadd.s32 %s55, 1
      %s57 = scalar_select %p54, %s55, %s56
      %p60 = pneg %p54
      %p61 = scmp.eq.s32.totalorder %s19, 3
      %p62 = por %p60, %p61
      %p63 = scmp.ne.s32.totalorder %s55, %s58
      %p64 = scmp.eq.s32.totalorder %s19, 0
      %p65 = por %p63, %p64
      %p66 = scmp.ne.s32.totalorder %s55, %s58
      %p67 = scmp.eq.s32.totalorder %s24, 3
      %p68 = por %p66, %p67
      %p69 = scmp.ne.s32.totalorder %s58, %s59
      %p70 = scmp.eq.s32.totalorder %s24, 0
      %p71 = por %p69, %p70
      %p72 = scmp.ne.s32.totalorder %s58, %s59
      %p73 = scmp.eq.s32.totalorder %s25, 3
      %p74 = por %p72, %p73
      %p76 = scmp.ne.s32.totalorder %s59, %s75
      %p77 = scmp.eq.s32.totalorder %s25, 0
      %p78 = por %p76, %p77
      %s80 = sadd.s32 %s79, 1
      %p83 = scmp.eq.s32.totalorder %s19, 3
      %p84 = scmp.ne.s32.totalorder %s79, %s81
      %p85 = scmp.eq.s32.totalorder %s19, 0
      %p86 = por %p84, %p85
      %p87 = scmp.ne.s32.totalorder %s79, %s81
      %p88 = scmp.eq.s32.totalorder %s24, 3
      %p89 = por %p87, %p88
      %p90 = scmp.ne.s32.totalorder %s81, %s82
      %p91 = scmp.eq.s32.totalorder %s24, 0
      %p92 = por %p90, %p91
      %p93 = scmp.ne.s32.totalorder %s81, %s82
      %p94 = scmp.eq.s32.totalorder %s25, 3
      %p95 = por %p93, %p94
      %p97 = scmp.ne.s32.totalorder %s82, %s96
      %p98 = scmp.eq.s32.totalorder %s25, 0
      %p99 = por %p97, %p98
      %s101 = sadd.s32 %s100, 1
      %p104 = scmp.eq.s32.totalorder %s19, 3
      %p105 = scmp.ne.s32.totalorder %s100, %s102
      %p106 = scmp.eq.s32.totalorder %s19, 0
      %p107 = por %p105, %p106
      %p108 = scmp.ne.s32.totalorder %s100, %s102
      %p109 = scmp.eq.s32.totalorder %s24, 3
      %p110 = por %p108, %p109
      %p111 = scmp.ne.s32.totalorder %s102, %s103
      %p112 = scmp.eq.s32.totalorder %s24, 0
      %p113 = por %p111, %p112
      %p114 = scmp.ne.s32.totalorder %s102, %s103
      %p115 = scmp.eq.s32.totalorder %s25, 3
      %p116 = por %p114, %p115
      %p118 = scmp.ne.s32.totalorder %s103, %s117
      %p119 = scmp.eq.s32.totalorder %s25, 0
      %p120 = por %p118, %p119
      %s122 = sadd.s32 %s121, 1
      %p125 = scmp.eq.s32.totalorder %s19, 3
      %p126 = scmp.ne.s32.totalorder %s121, %s123
      %p127 = scmp.eq.s32.totalorder %s19, 0
      %p128 = por %p126, %p127
      %p129 = scmp.ne.s32.totalorder %s121, %s123
      %p130 = scmp.eq.s32.totalorder %s24, 3
      %p131 = por %p129, %p130
      %p132 = scmp.ne.s32.totalorder %s123, %s124
      %p133 = scmp.eq.s32.totalorder %s24, 0
      %p134 = por %p132, %p133
      %p135 = scmp.ne.s32.totalorder %s123, %s124
      %p136 = scmp.eq.s32.totalorder %s25, 3
      %p137 = por %p135, %p136
      %p139 = scmp.ne.s32.totalorder %s124, %s138
      %p140 = scmp.eq.s32.totalorder %s25, 0
      %p141 = por %p139, %p140
      %s143 = sadd.s32 %s142, 1
      %p146 = scmp.eq.s32.totalorder %s19, 3
      %p147 = scmp.ne.s32.totalorder %s142, %s144
      %p148 = scmp.eq.s32.totalorder %s19, 0
      %p149 = por %p147, %p148
      %p150 = scmp.ne.s32.totalorder %s142, %s144
      %p151 = scmp.eq.s32.totalorder %s24, 3
      %p152 = por %p150, %p151
      %p153 = scmp.ne.s32.totalorder %s144, %s145
      %p154 = scmp.eq.s32.totalorder %s24, 0
      %p155 = por %p153, %p154
      %p156 = scmp.ne.s32.totalorder %s144, %s145
      %p157 = scmp.eq.s32.totalorder %s25, 3
      %p158 = por %p156, %p157
      %p160 = scmp.ne.s32.totalorder %s145, %s159
      %p161 = scmp.eq.s32.totalorder %s25, 0
      %p162 = por %p160, %p161
      %p163 = scmp.le.s32.totalorder 1, %s19
      %p164 = scmp.lt.s32.totalorder %s19, 5
      %p165 = pnand %p163, %p164
      %p166 = pneg %p165
      // Predicated region
      $region9: #{tpu_custom_call.1} parent=5 // pred_check
        _
      $region10: #{tpu_custom_call.1} parent=5 // pred_check_branch
        %168 = sbr.rel (%p165) target = $region12
      $region11: #{tpu_custom_call.1} parent=5 // pred_region
        %s169 = ssub.s32 %s19, 1
        // Predicated region
        $region13: #{tpu_custom_call.1} parent=11 // pred_check
          %p170 = pneg %p92
        $region14: #{tpu_custom_call.1} parent=11 // pred_check_branch
          %172 = sbr.rel (%p170) target = $region16
        $region15: #{tpu_custom_call.1} parent=11 // pred_region
          %s174 = ssub.s32 128, 128
          %175 = vsyncadd [#allocation7], %s174
          %s177 = sshll.u32 [#allocation8], 4
          %s178 = int_to_ptr.vmem [resolvable:$true] %s177
          %180 = dma.hbm_to_vmem [thread:$0]  %s2, 128, %s178, [#allocation7]
        $region16: #{tpu_custom_call.1} parent=11 // pred_fallthru
          _
        // Predicated region
        $region17: #{tpu_custom_call.1} parent=11 // pred_check
          %p181 = pneg %p113
        $region18: #{tpu_custom_call.1} parent=11 // pred_check_branch
          %183 = sbr.rel (%p181) target = $region20
        $region19: #{tpu_custom_call.1} parent=11 // pred_region
          _
        $region20: #{tpu_custom_call.1} parent=11 // pred_fallthru
          _
        // Predicated region
        $region21: #{tpu_custom_call.1} parent=11 // pred_check
          %p184 = pneg %p134
        $region22: #{tpu_custom_call.1} parent=11 // pred_check_branch
          %186 = sbr.rel (%p184) target = $region24
        $region23: #{tpu_custom_call.1} parent=11 // pred_region
          %s188 = ssub.s32 16, 16
          %189 = vsyncadd [#allocation10], %s188
          %s191 = sshll.u32 [#allocation9], 4
          %s192 = int_to_ptr.vmem [resolvable:$true] %s191
          %194 = dma.hbm_to_vmem [thread:$0]  %s4, 16, %s192, [#allocation10]
        $region24: #{tpu_custom_call.1} parent=11 // pred_fallthru
          _
      $region12: #{tpu_custom_call.1} parent=5 // pred_fallthru
        _
      %p195 = scmp.lt.s32.totalorder %s19, 4
      // Predicated region
      $region25: #{tpu_custom_call.1} parent=5 // pred_check
        %p196 = pneg %p195
      $region26: #{tpu_custom_call.1} parent=5 // pred_check_branch
        %198 = sbr.rel (%p196) target = $region28
      $region27: #{tpu_custom_call.1} parent=5 // pred_region
        // Predicated region
        $region29: #{tpu_custom_call.1} parent=27 // pred_check
          %p199 = pneg %p39
        $region30: #{tpu_custom_call.1} parent=27 // pred_check_branch
          %201 = sbr.rel (%p199) target = $region32
        $region31: #{tpu_custom_call.1} parent=27 // pred_region
          %s202 = sand.u32 %s29, 1
          %s203 = scalar_lea.sflag [#allocation4], %s202
          %s204 = sand.u32 %s29, 1
          %s205 = smul.addr %s204, 256
          %s206 = scalar_lea.vmem [#allocation3], %s205
          %s207 = smul.u32 4, %s19
          %s209 = ssub.s32 4096, 4096
          %210 = vsyncadd %s203, %s209
          %s211 = smul.addr %s207, 64
          %s212 = scalar_lea.hbm %s0, %s211
          %s213 = sshll.u32 %s206, 4
          %s214 = int_to_ptr.vmem [resolvable:$true] %s213
          %219 = dma.hbm_to_vmem [thread:$0]  %s212, 4096, %s214, %s203, 1024, 256, 16
        $region32: #{tpu_custom_call.1} parent=27 // pred_fallthru
          _
        // Predicated region
        $region33: #{tpu_custom_call.1} parent=27 // pred_check
          %p220 = pneg %p65
        $region34: #{tpu_custom_call.1} parent=27 // pred_check_branch
          %222 = sbr.rel (%p220) target = $region36
        $region35: #{tpu_custom_call.1} parent=27 // pred_region
          %s223 = sand.u32 %s19, 1
          %s224 = scalar_lea.sflag [#allocation7], %s223
          %s225 = sand.u32 %s55, 1
          %s226 = smul.addr %s225, 2048
          %s227 = scalar_lea.vmem [#allocation6], %s226
          %s228 = smul.u32 64, %s19
          %s230 = ssub.s32 32768, 32768
          %231 = vsyncadd %s224, %s230
          %s232 = smul.addr %s228, 8
          %s233 = smul.addr %s232, 64
          %s234 = scalar_lea.hbm %s1, %s233
          %s235 = sshll.u32 %s227, 4
          %s236 = int_to_ptr.vmem [resolvable:$true] %s235
          %241 = dma.hbm_to_vmem [thread:$0]  %s234, 32768, %s236, %s224, 512, 512, 32
        $region36: #{tpu_custom_call.1} parent=27 // pred_fallthru
          _
      $region28: #{tpu_custom_call.1} parent=5 // pred_fallthru
        _
      %p242 = scmp.le.s32.totalorder 1, %s19
      %p243 = scmp.lt.s32.totalorder %s19, 5
      %p244 = pnand %p242, %p243
      %p245 = pneg %p244
      // Predicated region
      $region37: #{tpu_custom_call.1} parent=5 // pred_check
        _
      $region38: #{tpu_custom_call.1} parent=5 // pred_check_branch
        %247 = sbr.rel (%p244) target = $region40
      $region39: #{tpu_custom_call.1} parent=5 // pred_region
        %s248 = ssub.s32 %s19, 1
        %s249 = sand.u32 %s32, 1
        %s250 = scalar_lea.sflag [#allocation4], %s249
        %s251 = sand.u32 %s32, 1
        %s252 = smul.addr %s251, 256
        %s253 = scalar_lea.vmem [#allocation3], %s252
        // Predicated region
        $region41: #{tpu_custom_call.1} parent=39 // pred_check
          %p254 = pneg %p45
        $region42: #{tpu_custom_call.1} parent=39 // pred_check_branch
          %256 = sbr.rel (%p254) target = $region44
        $region43: #{tpu_custom_call.1} parent=39 // pred_region
          %257 = dma.done %s250, 4096
        $region44: #{tpu_custom_call.1} parent=39 // pred_fallthru
          _
        %s258 = sand.u32 %s24, 1
        %s259 = scalar_lea.sflag [#allocation7], %s258
        %s260 = sand.u32 %s58, 1
        %s261 = smul.addr %s260, 2048
        %s262 = scalar_lea.vmem [#allocation6], %s261
        // Predicated region
        $region45: #{tpu_custom_call.1} parent=39 // pred_check
          %p263 = pneg %p71
        $region46: #{tpu_custom_call.1} parent=39 // pred_check_branch
          %265 = sbr.rel (%p263) target = $region48
        $region47: #{tpu_custom_call.1} parent=39 // pred_region
          %266 = dma.done %s259, 32768
        $region48: #{tpu_custom_call.1} parent=39 // pred_fallthru
          _
        // Predicated region
        $region49: #{tpu_custom_call.1} parent=39 // pred_check
          %p267 = pneg %p92
        $region50: #{tpu_custom_call.1} parent=39 // pred_check_branch
          %269 = sbr.rel (%p267) target = $region52
        $region51: #{tpu_custom_call.1} parent=39 // pred_region
          %270 = dma.done [#allocation7], 128
        $region52: #{tpu_custom_call.1} parent=39 // pred_fallthru
          _
        // Predicated region
        $region53: #{tpu_custom_call.1} parent=39 // pred_check
          %p271 = pneg %p134
        $region54: #{tpu_custom_call.1} parent=39 // pred_check_branch
          %273 = sbr.rel (%p271) target = $region56
        $region55: #{tpu_custom_call.1} parent=39 // pred_region
          %274 = dma.done [#allocation10], 16
        $region56: #{tpu_custom_call.1} parent=39 // pred_fallthru
          _
        %s275 = sand.u32 %s32, 1
        %s276 = scalar_lea.sflag [#allocation4], %s275
        %s277 = sand.u32 %s32, 1
        %s278 = smul.addr %s277, 256
        %s279 = scalar_lea.vmem [#allocation3], %s278
        %p280 = pneg %p45
        %p281 = pneg %p42
        %s282 = sand.u32 %s24, 1
        %s283 = scalar_lea.sflag [#allocation7], %s282
        %s284 = sand.u32 %s58, 1
        %s285 = smul.addr %s284, 2048
        %s286 = scalar_lea.vmem [#allocation6], %s285
        %p287 = pneg %p71
        %p288 = pneg %p68
        %p289 = pneg %p92
        %p290 = pneg %p89
        %p291 = pneg %p113
        %p292 = pneg %p110
        %p293 = pneg %p134
        %p294 = pneg %p131
        %p295 = pneg %p155
        %p296 = pneg %p152
        %s297 = smul.u32 4, %s24
        %s298 = smul.u32 64, %s24
        %p299 = scmp.eq.s32.totalorder %s24, 0
        // Predicated region
        $region57: #{tpu_custom_call.1} parent=39 // pred_check
          %p300 = pneg %p299
        $region58: #{tpu_custom_call.1} parent=39 // pred_check_branch
          %302 = sbr.rel (%p300) target = $region60
        $region59: #{tpu_custom_call.1} parent=39 // pred_region
          %303 = vst [vmem:[#allocation2] sm:$0xff] 0.0
          %304 = vst [vmem:[#allocation2 + $0x8] sm:$0xff] 0.0
        $region60: #{tpu_custom_call.1} parent=39 // pred_fallthru
          _
        %v305 = vld [vmem:[%s253] sm:$0xff]
        %v306 = vld [vmem:[%s253 + $0x8] sm:$0xff]
        %v307 = vld [vmem:[%s253 + $0x10] sm:$0xff]
        %v308 = vld [vmem:[%s253 + $0x18] sm:$0xff]
        %v309 = vld [vmem:[%s253 + $0x20] sm:$0xff]
        %v310 = vld [vmem:[%s253 + $0x28] sm:$0xff]
        %v311 = vld [vmem:[%s253 + $0x30] sm:$0xff]
        %v312 = vld [vmem:[%s253 + $0x38] sm:$0xff]
        %v313 = vld [vmem:[%s253 + $0x40] sm:$0xff]
        %v314 = vld [vmem:[%s253 + $0x48] sm:$0xff]
        %v315 = vld [vmem:[%s253 + $0x50] sm:$0xff]
        %v316 = vld [vmem:[%s253 + $0x58] sm:$0xff]
        %v317 = vld [vmem:[%s253 + $0x60] sm:$0xff]
        %v318 = vld [vmem:[%s253 + $0x68] sm:$0xff]
        %v319 = vld [vmem:[%s253 + $0x70] sm:$0xff]
        %v320 = vld [vmem:[%s253 + $0x78] sm:$0xff]
        %v321 = vld [vmem:[%s253 + $0x80] sm:$0xff]
        %v322 = vld [vmem:[%s253 + $0x88] sm:$0xff]
        %v323 = vld [vmem:[%s253 + $0x90] sm:$0xff]
        %v324 = vld [vmem:[%s253 + $0x98] sm:$0xff]
        %v325 = vld [vmem:[%s253 + $0xa0] sm:$0xff]
        %v326 = vld [vmem:[%s253 + $0xa8] sm:$0xff]
        %v327 = vld [vmem:[%s253 + $0xb0] sm:$0xff]
        %v328 = vld [vmem:[%s253 + $0xb8] sm:$0xff]
        %v329 = vld [vmem:[%s253 + $0xc0] sm:$0xff]
        %v330 = vld [vmem:[%s253 + $0xc8] sm:$0xff]
        %v331 = vld [vmem:[%s253 + $0xd0] sm:$0xff]
        %v332 = vld [vmem:[%s253 + $0xd8] sm:$0xff]
        %v333 = vld [vmem:[%s253 + $0xe0] sm:$0xff]
        %v334 = vld [vmem:[%s253 + $0xe8] sm:$0xff]
        %v335 = vld [vmem:[%s253 + $0xf0] sm:$0xff]
        %v336 = vld [vmem:[%s253 + $0xf8] sm:$0xff]
        %v337 = vunpack.c.l.bf16 %v305
        %v338 = vunpack.c.h.bf16 %v305
        %v339 = vunpack.c.l.bf16 %v306
        %v340 = vunpack.c.h.bf16 %v306
        %v341 = vunpack.c.l.bf16 %v307
        %v342 = vunpack.c.h.bf16 %v307
        %v343 = vunpack.c.l.bf16 %v308
        %v344 = vunpack.c.h.bf16 %v308
        %v345 = vunpack.c.l.bf16 %v309
        %v346 = vunpack.c.h.bf16 %v309
        %v347 = vunpack.c.l.bf16 %v310
        %v348 = vunpack.c.h.bf16 %v310
        %v349 = vunpack.c.l.bf16 %v311
        %v350 = vunpack.c.h.bf16 %v311
        %v351 = vunpack.c.l.bf16 %v312
        %v352 = vunpack.c.h.bf16 %v312
        %v353 = vunpack.c.l.bf16 %v313
        %v354 = vunpack.c.h.bf16 %v313
        %v355 = vunpack.c.l.bf16 %v314
        %v356 = vunpack.c.h.bf16 %v314
        %v357 = vunpack.c.l.bf16 %v315
        %v358 = vunpack.c.h.bf16 %v315
        %v359 = vunpack.c.l.bf16 %v316
        %v360 = vunpack.c.h.bf16 %v316
        %v361 = vunpack.c.l.bf16 %v317
        %v362 = vunpack.c.h.bf16 %v317
        %v363 = vunpack.c.l.bf16 %v318
        %v364 = vunpack.c.h.bf16 %v318
        %v365 = vunpack.c.l.bf16 %v319
        %v366 = vunpack.c.h.bf16 %v319
        %v367 = vunpack.c.l.bf16 %v320
        %v368 = vunpack.c.h.bf16 %v320
        %v369 = vunpack.c.l.bf16 %v321
        %v370 = vunpack.c.h.bf16 %v321
        %v371 = vunpack.c.l.bf16 %v322
        %v372 = vunpack.c.h.bf16 %v322
        %v373 = vunpack.c.l.bf16 %v323
        %v374 = vunpack.c.h.bf16 %v323
        %v375 = vunpack.c.l.bf16 %v324
        %v376 = vunpack.c.h.bf16 %v324
        %v377 = vunpack.c.l.bf16 %v325
        %v378 = vunpack.c.h.bf16 %v325
        %v379 = vunpack.c.l.bf16 %v326
        %v380 = vunpack.c.h.bf16 %v326
        %v381 = vunpack.c.l.bf16 %v327
        %v382 = vunpack.c.h.bf16 %v327
        %v383 = vunpack.c.l.bf16 %v328
        %v384 = vunpack.c.h.bf16 %v328
        %v385 = vunpack.c.l.bf16 %v329
        %v386 = vunpack.c.h.bf16 %v329
        %v387 = vunpack.c.l.bf16 %v330
        %v388 = vunpack.c.h.bf16 %v330
        %v389 = vunpack.c.l.bf16 %v331
        %v390 = vunpack.c.h.bf16 %v331
        %v391 = vunpack.c.l.bf16 %v332
        %v392 = vunpack.c.h.bf16 %v332
        %v393 = vunpack.c.l.bf16 %v333
        %v394 = vunpack.c.h.bf16 %v333
        %v395 = vunpack.c.l.bf16 %v334
        %v396 = vunpack.c.h.bf16 %v334
        %v397 = vunpack.c.l.bf16 %v335
        %v398 = vunpack.c.h.bf16 %v335
        %v399 = vunpack.c.l.bf16 %v336
        %v400 = vunpack.c.h.bf16 %v336
        %v401 = vadd.f32 %v337, %v341
        %v402 = vadd.f32 %v401, %v345
        %v403 = vadd.f32 %v402, %v349
        %v404 = vadd.f32 %v403, %v353
        %v405 = vadd.f32 %v404, %v357
        %v406 = vadd.f32 %v405, %v361
        %v407 = vadd.f32 %v406, %v365
        %v408 = vrot.slane %v407, 4
        %v409 = vadd.f32 %v407, %v408
        %v410 = vrot.slane %v409, 2
        %v411 = vadd.f32 %v409, %v410
        %v412 = vrot.slane %v411, 1
        %v413 = vadd.f32 %v411, %v412
        %v414 = vadd.f32 %v338, %v342
        %v415 = vadd.f32 %v414, %v346
        %v416 = vadd.f32 %v415, %v350
        %v417 = vadd.f32 %v416, %v354
        %v418 = vadd.f32 %v417, %v358
        %v419 = vadd.f32 %v418, %v362
        %v420 = vadd.f32 %v419, %v366
        %v421 = vrot.slane %v420, 4
        %v422 = vadd.f32 %v420, %v421
        %v423 = vrot.slane %v422, 2
        %v424 = vadd.f32 %v422, %v423
        %v425 = vrot.slane %v424, 1
        %v426 = vadd.f32 %v424, %v425
        %v427 = vadd.f32 %v339, %v343
        %v428 = vadd.f32 %v427, %v347
        %v429 = vadd.f32 %v428, %v351
        %v430 = vadd.f32 %v429, %v355
        %v431 = vadd.f32 %v430, %v359
        %v432 = vadd.f32 %v431, %v363
        %v433 = vadd.f32 %v432, %v367
        %v434 = vrot.slane %v433, 4
        %v435 = vadd.f32 %v433, %v434
        %v436 = vrot.slane %v435, 2
        %v437 = vadd.f32 %v435, %v436
        %v438 = vrot.slane %v437, 1
        %v439 = vadd.f32 %v437, %v438
        %v440 = vadd.f32 %v340, %v344
        %v441 = vadd.f32 %v440, %v348
        %v442 = vadd.f32 %v441, %v352
        %v443 = vadd.f32 %v442, %v356
        %v444 = vadd.f32 %v443, %v360
        %v445 = vadd.f32 %v444, %v364
        %v446 = vadd.f32 %v445, %v368
        %v447 = vrot.slane %v446, 4
        %v448 = vadd.f32 %v446, %v447
        %v449 = vrot.slane %v448, 2
        %v450 = vadd.f32 %v448, %v449
        %v451 = vrot.slane %v450, 1
        %v452 = vadd.f32 %v450, %v451
        %v453 = vadd.f32 %v369, %v373
        %v454 = vadd.f32 %v453, %v377
        %v455 = vadd.f32 %v454, %v381
        %v456 = vadd.f32 %v455, %v385
        %v457 = vadd.f32 %v456, %v389
        %v458 = vadd.f32 %v457, %v393
        %v459 = vadd.f32 %v458, %v397
        %v460 = vrot.slane %v459, 4
        %v461 = vadd.f32 %v459, %v460
        %v462 = vrot.slane %v461, 2
        %v463 = vadd.f32 %v461, %v462
        %v464 = vrot.slane %v463, 1
        %v465 = vadd.f32 %v463, %v464
        %v466 = vadd.f32 %v370, %v374
        %v467 = vadd.f32 %v466, %v378
        %v468 = vadd.f32 %v467, %v382
        %v469 = vadd.f32 %v468, %v386
        %v470 = vadd.f32 %v469, %v390
        %v471 = vadd.f32 %v470, %v394
        %v472 = vadd.f32 %v471, %v398
        %v473 = vrot.slane %v472, 4
        %v474 = vadd.f32 %v472, %v473
        %v475 = vrot.slane %v474, 2
        %v476 = vadd.f32 %v474, %v475
        %v477 = vrot.slane %v476, 1
        %v478 = vadd.f32 %v476, %v477
        %v479 = vadd.f32 %v371, %v375
        %v480 = vadd.f32 %v479, %v379
        %v481 = vadd.f32 %v480, %v383
        %v482 = vadd.f32 %v481, %v387
        %v483 = vadd.f32 %v482, %v391
        %v484 = vadd.f32 %v483, %v395
        %v485 = vadd.f32 %v484, %v399
        %v486 = vrot.slane %v485, 4
        %v487 = vadd.f32 %v485, %v486
        %v488 = vrot.slane %v487, 2
        %v489 = vadd.f32 %v487, %v488
        %v490 = vrot.slane %v489, 1
        %v491 = vadd.f32 %v489, %v490
        %v492 = vadd.f32 %v372, %v376
        %v493 = vadd.f32 %v492, %v380
        %v494 = vadd.f32 %v493, %v384
        %v495 = vadd.f32 %v494, %v388
        %v496 = vadd.f32 %v495, %v392
        %v497 = vadd.f32 %v496, %v396
        %v498 = vadd.f32 %v497, %v400
        %v499 = vrot.slane %v498, 4
        %v500 = vadd.f32 %v498, %v499
        %v501 = vrot.slane %v500, 2
        %v502 = vadd.f32 %v500, %v501
        %v503 = vrot.slane %v502, 1
        %v504 = vadd.f32 %v502, %v503
        %v505 = vpack.c.bf16 %v413, %v413
        %v506 = vpack.c.bf16 %v426, %v426
        %v507 = vpack.c.bf16 %v439, %v439
        %v508 = vpack.c.bf16 %v452, %v452
        %v509 = vpack.c.bf16 %v465, %v465
        %v510 = vpack.c.bf16 %v478, %v478
        %v511 = vpack.c.bf16 %v491, %v491
        %v512 = vpack.c.bf16 %v504, %v504
        %v513 = vld [vmem:[#allocation2] sm:$0xff]
        %v514 = vld [vmem:[#allocation2 + $0x8] sm:$0xff]
        %v515 = vld [vmem:[%s262] sm:$0xff]
        %v516 = vld [vmem:[%s262 + $0x8] sm:$0xff]
        %v517 = vld [vmem:[%s262 + $0x10] sm:$0xff]
        %v518 = vld [vmem:[%s262 + $0x18] sm:$0xff]
        %v519 = vld [vmem:[%s262 + $0x20] sm:$0xff]
        %v520 = vld [vmem:[%s262 + $0x28] sm:$0xff]
        %v521 = vld [vmem:[%s262 + $0x30] sm:$0xff]
        %v522 = vld [vmem:[%s262 + $0x38] sm:$0xff]
        %v523 = vld [vmem:[%s262 + $0x40] sm:$0xff]
        %v524 = vld [vmem:[%s262 + $0x48] sm:$0xff]
        %v525 = vld [vmem:[%s262 + $0x50] sm:$0xff]
        %v526 = vld [vmem:[%s262 + $0x58] sm:$0xff]
        %v527 = vld [vmem:[%s262 + $0x60] sm:$0xff]
        %v528 = vld [vmem:[%s262 + $0x68] sm:$0xff]
        %v529 = vld [vmem:[%s262 + $0x70] sm:$0xff]
        %v530 = vld [vmem:[%s262 + $0x78] sm:$0xff]
        %v531 = vld [vmem:[%s262 + $0x80] sm:$0xff]
        %v532 = vld [vmem:[%s262 + $0x88] sm:$0xff]
        %v533 = vld [vmem:[%s262 + $0x90] sm:$0xff]
        %v534 = vld [vmem:[%s262 + $0x98] sm:$0xff]
        %v535 = vld [vmem:[%s262 + $0xa0] sm:$0xff]
        %v536 = vld [vmem:[%s262 + $0xa8] sm:$0xff]
        %v537 = vld [vmem:[%s262 + $0xb0] sm:$0xff]
        %v538 = vld [vmem:[%s262 + $0xb8] sm:$0xff]
        %v539 = vld [vmem:[%s262 + $0xc0] sm:$0xff]
        %v540 = vld [vmem:[%s262 + $0xc8] sm:$0xff]
        %v541 = vld [vmem:[%s262 + $0xd0] sm:$0xff]
        %v542 = vld [vmem:[%s262 + $0xd8] sm:$0xff]
        %v543 = vld [vmem:[%s262 + $0xe0] sm:$0xff]
        %v544 = vld [vmem:[%s262 + $0xe8] sm:$0xff]
        %v545 = vld [vmem:[%s262 + $0xf0] sm:$0xff]
        %v546 = vld [vmem:[%s262 + $0xf8] sm:$0xff]
        %v547 = vld [vmem:[%s262 + $0x100] sm:$0xff]
        %v548 = vld [vmem:[%s262 + $0x108] sm:$0xff]
        %v549 = vld [vmem:[%s262 + $0x110] sm:$0xff]
        %v550 = vld [vmem:[%s262 + $0x118] sm:$0xff]
        %v551 = vld [vmem:[%s262 + $0x120] sm:$0xff]
        %v552 = vld [vmem:[%s262 + $0x128] sm:$0xff]
        %v553 = vld [vmem:[%s262 + $0x130] sm:$0xff]
        %v554 = vld [vmem:[%s262 + $0x138] sm:$0xff]
        %v555 = vld [vmem:[%s262 + $0x140] sm:$0xff]
        %v556 = vld [vmem:[%s262 + $0x148] sm:$0xff]
        %v557 = vld [vmem:[%s262 + $0x150] sm:$0xff]
        %v558 = vld [vmem:[%s262 + $0x158] sm:$0xff]
        %v559 = vld [vmem:[%s262 + $0x160] sm:$0xff]
        %v560 = vld [vmem:[%s262 + $0x168] sm:$0xff]
        %v561 = vld [vmem:[%s262 + $0x170] sm:$0xff]
        %v562 = vld [vmem:[%s262 + $0x178] sm:$0xff]
        %v563 = vld [vmem:[%s262 + $0x180] sm:$0xff]
        %v564 = vld [vmem:[%s262 + $0x188] sm:$0xff]
        %v565 = vld [vmem:[%s262 + $0x190] sm:$0xff]
        %v566 = vld [vmem:[%s262 + $0x198] sm:$0xff]
        %v567 = vld [vmem:[%s262 + $0x1a0] sm:$0xff]
        %v568 = vld [vmem:[%s262 + $0x1a8] sm:$0xff]
        %v569 = vld [vmem:[%s262 + $0x1b0] sm:$0xff]
        %v570 = vld [vmem:[%s262 + $0x1b8] sm:$0xff]
        %v571 = vld [vmem:[%s262 + $0x1c0] sm:$0xff]
        %v572 = vld [vmem:[%s262 + $0x1c8] sm:$0xff]
        %v573 = vld [vmem:[%s262 + $0x1d0] sm:$0xff]
        %v574 = vld [vmem:[%s262 + $0x1d8] sm:$0xff]
        %v575 = vld [vmem:[%s262 + $0x1e0] sm:$0xff]
        %v576 = vld [vmem:[%s262 + $0x1e8] sm:$0xff]
        %v577 = vld [vmem:[%s262 + $0x1f0] sm:$0xff]
        %v578 = vld [vmem:[%s262 + $0x1f8] sm:$0xff]
        %v579 = vld [vmem:[%s262 + $0x200] sm:$0xff]
        %v580 = vld [vmem:[%s262 + $0x208] sm:$0xff]
        %v581 = vld [vmem:[%s262 + $0x210] sm:$0xff]
        %v582 = vld [vmem:[%s262 + $0x218] sm:$0xff]
        %v583 = vld [vmem:[%s262 + $0x220] sm:$0xff]
        %v584 = vld [vmem:[%s262 + $0x228] sm:$0xff]
        %v585 = vld [vmem:[%s262 + $0x230] sm:$0xff]
        %v586 = vld [vmem:[%s262 + $0x238] sm:$0xff]
        %v587 = vld [vmem:[%s262 + $0x240] sm:$0xff]
        %v588 = vld [vmem:[%s262 + $0x248] sm:$0xff]
        %v589 = vld [vmem:[%s262 + $0x250] sm:$0xff]
        %v590 = vld [vmem:[%s262 + $0x258] sm:$0xff]
        %v591 = vld [vmem:[%s262 + $0x260] sm:$0xff]
        %v592 = vld [vmem:[%s262 + $0x268] sm:$0xff]
        %v593 = vld [vmem:[%s262 + $0x270] sm:$0xff]
        %v594 = vld [vmem:[%s262 + $0x278] sm:$0xff]
        %v595 = vld [vmem:[%s262 + $0x280] sm:$0xff]
        %v596 = vld [vmem:[%s262 + $0x288] sm:$0xff]
        %v597 = vld [vmem:[%s262 + $0x290] sm:$0xff]
        %v598 = vld [vmem:[%s262 + $0x298] sm:$0xff]
        %v599 = vld [vmem:[%s262 + $0x2a0] sm:$0xff]
        %v600 = vld [vmem:[%s262 + $0x2a8] sm:$0xff]
        %v601 = vld [vmem:[%s262 + $0x2b0] sm:$0xff]
        %v602 = vld [vmem:[%s262 + $0x2b8] sm:$0xff]
        %v603 = vld [vmem:[%s262 + $0x2c0] sm:$0xff]
        %v604 = vld [vmem:[%s262 + $0x2c8] sm:$0xff]
        %v605 = vld [vmem:[%s262 + $0x2d0] sm:$0xff]
        %v606 = vld [vmem:[%s262 + $0x2d8] sm:$0xff]
        %v607 = vld [vmem:[%s262 + $0x2e0] sm:$0xff]
        %v608 = vld [vmem:[%s262 + $0x2e8] sm:$0xff]
        %v609 = vld [vmem:[%s262 + $0x2f0] sm:$0xff]
        %v610 = vld [vmem:[%s262 + $0x2f8] sm:$0xff]
        %v611 = vld [vmem:[%s262 + $0x300] sm:$0xff]
        %v612 = vld [vmem:[%s262 + $0x308] sm:$0xff]
        %v613 = vld [vmem:[%s262 + $0x310] sm:$0xff]
        %v614 = vld [vmem:[%s262 + $0x318] sm:$0xff]
        %v615 = vld [vmem:[%s262 + $0x320] sm:$0xff]
        %v616 = vld [vmem:[%s262 + $0x328] sm:$0xff]
        %v617 = vld [vmem:[%s262 + $0x330] sm:$0xff]
        %v618 = vld [vmem:[%s262 + $0x338] sm:$0xff]
        %v619 = vld [vmem:[%s262 + $0x340] sm:$0xff]
        %v620 = vld [vmem:[%s262 + $0x348] sm:$0xff]
        %v621 = vld [vmem:[%s262 + $0x350] sm:$0xff]
        %v622 = vld [vmem:[%s262 + $0x358] sm:$0xff]
        %v623 = vld [vmem:[%s262 + $0x360] sm:$0xff]
        %v624 = vld [vmem:[%s262 + $0x368] sm:$0xff]
        %v625 = vld [vmem:[%s262 + $0x370] sm:$0xff]
        %v626 = vld [vmem:[%s262 + $0x378] sm:$0xff]
        %v627 = vld [vmem:[%s262 + $0x380] sm:$0xff]
        %v628 = vld [vmem:[%s262 + $0x388] sm:$0xff]
        %v629 = vld [vmem:[%s262 + $0x390] sm:$0xff]
        %v630 = vld [vmem:[%s262 + $0x398] sm:$0xff]
        %v631 = vld [vmem:[%s262 + $0x3a0] sm:$0xff]
        %v632 = vld [vmem:[%s262 + $0x3a8] sm:$0xff]
        %v633 = vld [vmem:[%s262 + $0x3b0] sm:$0xff]
        %v634 = vld [vmem:[%s262 + $0x3b8] sm:$0xff]
        %v635 = vld [vmem:[%s262 + $0x3c0] sm:$0xff]
        %v636 = vld [vmem:[%s262 + $0x3c8] sm:$0xff]
        %v637 = vld [vmem:[%s262 + $0x3d0] sm:$0xff]
        %v638 = vld [vmem:[%s262 + $0x3d8] sm:$0xff]
        %v639 = vld [vmem:[%s262 + $0x3e0] sm:$0xff]
        %v640 = vld [vmem:[%s262 + $0x3e8] sm:$0xff]
        %v641 = vld [vmem:[%s262 + $0x3f0] sm:$0xff]
        %v642 = vld [vmem:[%s262 + $0x3f8] sm:$0xff]
        %v643 = vld [vmem:[%s262 + $0x400] sm:$0xff]
        %v644 = vld [vmem:[%s262 + $0x408] sm:$0xff]
        %v645 = vld [vmem:[%s262 + $0x410] sm:$0xff]
        %v646 = vld [vmem:[%s262 + $0x418] sm:$0xff]
        %v647 = vld [vmem:[%s262 + $0x420] sm:$0xff]
        %v648 = vld [vmem:[%s262 + $0x428] sm:$0xff]
        %v649 = vld [vmem:[%s262 + $0x430] sm:$0xff]
        %v650 = vld [vmem:[%s262 + $0x438] sm:$0xff]
        %v651 = vld [vmem:[%s262 + $0x440] sm:$0xff]
        %v652 = vld [vmem:[%s262 + $0x448] sm:$0xff]
        %v653 = vld [vmem:[%s262 + $0x450] sm:$0xff]
        %v654 = vld [vmem:[%s262 + $0x458] sm:$0xff]
        %v655 = vld [vmem:[%s262 + $0x460] sm:$0xff]
        %v656 = vld [vmem:[%s262 + $0x468] sm:$0xff]
        %v657 = vld [vmem:[%s262 + $0x470] sm:$0xff]
        %v658 = vld [vmem:[%s262 + $0x478] sm:$0xff]
        %v659 = vld [vmem:[%s262 + $0x480] sm:$0xff]
        %v660 = vld [vmem:[%s262 + $0x488] sm:$0xff]
        %v661 = vld [vmem:[%s262 + $0x490] sm:$0xff]
        %v662 = vld [vmem:[%s262 + $0x498] sm:$0xff]
        %v663 = vld [vmem:[%s262 + $0x4a0] sm:$0xff]
        %v664 = vld [vmem:[%s262 + $0x4a8] sm:$0xff]
        %v665 = vld [vmem:[%s262 + $0x4b0] sm:$0xff]
        %v666 = vld [vmem:[%s262 + $0x4b8] sm:$0xff]
        %v667 = vld [vmem:[%s262 + $0x4c0] sm:$0xff]
        %v668 = vld [vmem:[%s262 + $0x4c8] sm:$0xff]
        %v669 = vld [vmem:[%s262 + $0x4d0] sm:$0xff]
        %v670 = vld [vmem:[%s262 + $0x4d8] sm:$0xff]
        %v671 = vld [vmem:[%s262 + $0x4e0] sm:$0xff]
        %v672 = vld [vmem:[%s262 + $0x4e8] sm:$0xff]
        %v673 = vld [vmem:[%s262 + $0x4f0] sm:$0xff]
        %v674 = vld [vmem:[%s262 + $0x4f8] sm:$0xff]
        %v675 = vld [vmem:[%s262 + $0x500] sm:$0xff]
        %v676 = vld [vmem:[%s262 + $0x508] sm:$0xff]
        %v677 = vld [vmem:[%s262 + $0x510] sm:$0xff]
        %v678 = vld [vmem:[%s262 + $0x518] sm:$0xff]
        %v679 = vld [vmem:[%s262 + $0x520] sm:$0xff]
        %v680 = vld [vmem:[%s262 + $0x528] sm:$0xff]
        %v681 = vld [vmem:[%s262 + $0x530] sm:$0xff]
        %v682 = vld [vmem:[%s262 + $0x538] sm:$0xff]
        %v683 = vld [vmem:[%s262 + $0x540] sm:$0xff]
        %v684 = vld [vmem:[%s262 + $0x548] sm:$0xff]
        %v685 = vld [vmem:[%s262 + $0x550] sm:$0xff]
        %v686 = vld [vmem:[%s262 + $0x558] sm:$0xff]
        %v687 = vld [vmem:[%s262 + $0x560] sm:$0xff]
        %v688 = vld [vmem:[%s262 + $0x568] sm:$0xff]
        %v689 = vld [vmem:[%s262 + $0x570] sm:$0xff]
        %v690 = vld [vmem:[%s262 + $0x578] sm:$0xff]
        %v691 = vld [vmem:[%s262 + $0x580] sm:$0xff]
        %v692 = vld [vmem:[%s262 + $0x588] sm:$0xff]
        %v693 = vld [vmem:[%s262 + $0x590] sm:$0xff]
        %v694 = vld [vmem:[%s262 + $0x598] sm:$0xff]
        %v695 = vld [vmem:[%s262 + $0x5a0] sm:$0xff]
        %v696 = vld [vmem:[%s262 + $0x5a8] sm:$0xff]
        %v697 = vld [vmem:[%s262 + $0x5b0] sm:$0xff]
        %v698 = vld [vmem:[%s262 + $0x5b8] sm:$0xff]
        %v699 = vld [vmem:[%s262 + $0x5c0] sm:$0xff]
        %v700 = vld [vmem:[%s262 + $0x5c8] sm:$0xff]
        %v701 = vld [vmem:[%s262 + $0x5d0] sm:$0xff]
        %v702 = vld [vmem:[%s262 + $0x5d8] sm:$0xff]
        %v703 = vld [vmem:[%s262 + $0x5e0] sm:$0xff]
        %v704 = vld [vmem:[%s262 + $0x5e8] sm:$0xff]
        %v705 = vld [vmem:[%s262 + $0x5f0] sm:$0xff]
        %v706 = vld [vmem:[%s262 + $0x5f8] sm:$0xff]
        %v707 = vld [vmem:[%s262 + $0x600] sm:$0xff]
        %v708 = vld [vmem:[%s262 + $0x608] sm:$0xff]
        %v709 = vld [vmem:[%s262 + $0x610] sm:$0xff]
        %v710 = vld [vmem:[%s262 + $0x618] sm:$0xff]
        %v711 = vld [vmem:[%s262 + $0x620] sm:$0xff]
        %v712 = vld [vmem:[%s262 + $0x628] sm:$0xff]
        %v713 = vld [vmem:[%s262 + $0x630] sm:$0xff]
        %v714 = vld [vmem:[%s262 + $0x638] sm:$0xff]
        %v715 = vld [vmem:[%s262 + $0x640] sm:$0xff]
        %v716 = vld [vmem:[%s262 + $0x648] sm:$0xff]
        %v717 = vld [vmem:[%s262 + $0x650] sm:$0xff]
        %v718 = vld [vmem:[%s262 + $0x658] sm:$0xff]
        %v719 = vld [vmem:[%s262 + $0x660] sm:$0xff]
        %v720 = vld [vmem:[%s262 + $0x668] sm:$0xff]
        %v721 = vld [vmem:[%s262 + $0x670] sm:$0xff]
        %v722 = vld [vmem:[%s262 + $0x678] sm:$0xff]
        %v723 = vld [vmem:[%s262 + $0x680] sm:$0xff]
        %v724 = vld [vmem:[%s262 + $0x688] sm:$0xff]
        %v725 = vld [vmem:[%s262 + $0x690] sm:$0xff]
        %v726 = vld [vmem:[%s262 + $0x698] sm:$0xff]
        %v727 = vld [vmem:[%s262 + $0x6a0] sm:$0xff]
        %v728 = vld [vmem:[%s262 + $0x6a8] sm:$0xff]
        %v729 = vld [vmem:[%s262 + $0x6b0] sm:$0xff]
        %v730 = vld [vmem:[%s262 + $0x6b8] sm:$0xff]
        %v731 = vld [vmem:[%s262 + $0x6c0] sm:$0xff]
        %v732 = vld [vmem:[%s262 + $0x6c8] sm:$0xff]
        %v733 = vld [vmem:[%s262 + $0x6d0] sm:$0xff]
        %v734 = vld [vmem:[%s262 + $0x6d8] sm:$0xff]
        %v735 = vld [vmem:[%s262 + $0x6e0] sm:$0xff]
        %v736 = vld [vmem:[%s262 + $0x6e8] sm:$0xff]
        %v737 = vld [vmem:[%s262 + $0x6f0] sm:$0xff]
        %v738 = vld [vmem:[%s262 + $0x6f8] sm:$0xff]
        %v739 = vld [vmem:[%s262 + $0x700] sm:$0xff]
        %v740 = vld [vmem:[%s262 + $0x708] sm:$0xff]
        %v741 = vld [vmem:[%s262 + $0x710] sm:$0xff]
        %v742 = vld [vmem:[%s262 + $0x718] sm:$0xff]
        %v743 = vld [vmem:[%s262 + $0x720] sm:$0xff]
        %v744 = vld [vmem:[%s262 + $0x728] sm:$0xff]
        %v745 = vld [vmem:[%s262 + $0x730] sm:$0xff]
        %v746 = vld [vmem:[%s262 + $0x738] sm:$0xff]
        %v747 = vld [vmem:[%s262 + $0x740] sm:$0xff]
        %v748 = vld [vmem:[%s262 + $0x748] sm:$0xff]
        %v749 = vld [vmem:[%s262 + $0x750] sm:$0xff]
        %v750 = vld [vmem:[%s262 + $0x758] sm:$0xff]
        %v751 = vld [vmem:[%s262 + $0x760] sm:$0xff]
        %v752 = vld [vmem:[%s262 + $0x768] sm:$0xff]
        %v753 = vld [vmem:[%s262 + $0x770] sm:$0xff]
        %v754 = vld [vmem:[%s262 + $0x778] sm:$0xff]
        %v755 = vld [vmem:[%s262 + $0x780] sm:$0xff]
        %v756 = vld [vmem:[%s262 + $0x788] sm:$0xff]
        %v757 = vld [vmem:[%s262 + $0x790] sm:$0xff]
        %v758 = vld [vmem:[%s262 + $0x798] sm:$0xff]
        %v759 = vld [vmem:[%s262 + $0x7a0] sm:$0xff]
        %v760 = vld [vmem:[%s262 + $0x7a8] sm:$0xff]
        %v761 = vld [vmem:[%s262 + $0x7b0] sm:$0xff]
        %v762 = vld [vmem:[%s262 + $0x7b8] sm:$0xff]
        %v763 = vld [vmem:[%s262 + $0x7c0] sm:$0xff]
        %v764 = vld [vmem:[%s262 + $0x7c8] sm:$0xff]
        %v765 = vld [vmem:[%s262 + $0x7d0] sm:$0xff]
        %v766 = vld [vmem:[%s262 + $0x7d8] sm:$0xff]
        %v767 = vld [vmem:[%s262 + $0x7e0] sm:$0xff]
        %v768 = vld [vmem:[%s262 + $0x7e8] sm:$0xff]
        %v769 = vld [vmem:[%s262 + $0x7f0] sm:$0xff]
        %v770 = vld [vmem:[%s262 + $0x7f8] sm:$0xff]
        %v779 = vunpack.c.l.b16 %v505
        %v780 = vunpack.c.l.b16 %v506
        %v781 = vunpack.c.l.b16 %v507
        %v782 = vunpack.c.l.b16 %v508
        %v783 = vunpack.c.l.b16 %v509
        %v784 = vunpack.c.l.b16 %v510
        %v785 = vunpack.c.l.b16 %v511
        %v786 = vunpack.c.l.b16 %v512
        %vm787 = vcmask 1041409
        %v788 = vsel %vm787, %v783, %v779
        %v789 = vsel %vm787, %v784, %v780
        %v790 = vsel %vm787, %v785, %v781
        %v791 = vsel %vm787, %v786, %v782
        %v792 = vpack.c.b16 %v788, %v788
        %v793 = vpack.c.b16 %v789, %v789
        %v794 = vpack.c.b16 %v790, %v790
        %v795 = vpack.c.b16 %v791, %v791
        %v1056 = vunpack.c.l.b16 %v515
        %v1057 = vunpack.c.h.b16 %v515
        %v1058 = vunpack.c.l.b16 %v516
        %v1059 = vunpack.c.h.b16 %v516
        %v1060 = vunpack.c.l.b16 %v517
        %v1061 = vunpack.c.h.b16 %v517
        %v1062 = vunpack.c.l.b16 %v518
        %v1063 = vunpack.c.h.b16 %v518
        %v1064 = vunpack.c.l.b16 %v519
        %v1065 = vunpack.c.h.b16 %v519
        %v1066 = vunpack.c.l.b16 %v520
        %v1067 = vunpack.c.h.b16 %v520
        %v1068 = vunpack.c.l.b16 %v521
        %v1069 = vunpack.c.h.b16 %v521
        %v1070 = vunpack.c.l.b16 %v522
        %v1071 = vunpack.c.h.b16 %v522
        %v1072 = vunpack.c.l.b16 %v523
        %v1073 = vunpack.c.h.b16 %v523
        %v1074 = vunpack.c.l.b16 %v524
        %v1075 = vunpack.c.h.b16 %v524
        %v1076 = vunpack.c.l.b16 %v525
        %v1077 = vunpack.c.h.b16 %v525
        %v1078 = vunpack.c.l.b16 %v526
        %v1079 = vunpack.c.h.b16 %v526
        %v1080 = vunpack.c.l.b16 %v527
        %v1081 = vunpack.c.h.b16 %v527
        %v1082 = vunpack.c.l.b16 %v528
        %v1083 = vunpack.c.h.b16 %v528
        %v1084 = vunpack.c.l.b16 %v529
        %v1085 = vunpack.c.h.b16 %v529
        %v1086 = vunpack.c.l.b16 %v530
        %v1087 = vunpack.c.h.b16 %v530
        %v1088 = vunpack.c.l.b16 %v531
        %v1089 = vunpack.c.h.b16 %v531
        %v1090 = vunpack.c.l.b16 %v532
        %v1091 = vunpack.c.h.b16 %v532
        %v1092 = vunpack.c.l.b16 %v533
        %v1093 = vunpack.c.h.b16 %v533
        %v1094 = vunpack.c.l.b16 %v534
        %v1095 = vunpack.c.h.b16 %v534
        %v1096 = vunpack.c.l.b16 %v535
        %v1097 = vunpack.c.h.b16 %v535
        %v1098 = vunpack.c.l.b16 %v536
        %v1099 = vunpack.c.h.b16 %v536
        %v1100 = vunpack.c.l.b16 %v537
        %v1101 = vunpack.c.h.b16 %v537
        %v1102 = vunpack.c.l.b16 %v538
        %v1103 = vunpack.c.h.b16 %v538
        %v1104 = vunpack.c.l.b16 %v539
        %v1105 = vunpack.c.h.b16 %v539
        %v1106 = vunpack.c.l.b16 %v540
        %v1107 = vunpack.c.h.b16 %v540
        %v1108 = vunpack.c.l.b16 %v541
        %v1109 = vunpack.c.h.b16 %v541
        %v1110 = vunpack.c.l.b16 %v542
        %v1111 = vunpack.c.h.b16 %v542
        %v1112 = vunpack.c.l.b16 %v543
        %v1113 = vunpack.c.h.b16 %v543
        %v1114 = vunpack.c.l.b16 %v544
        %v1115 = vunpack.c.h.b16 %v544
        %v1116 = vunpack.c.l.b16 %v545
        %v1117 = vunpack.c.h.b16 %v545
        %v1118 = vunpack.c.l.b16 %v546
        %v1119 = vunpack.c.h.b16 %v546
        %v1120 = vunpack.c.l.b16 %v547
        %v1121 = vunpack.c.h.b16 %v547
        %v1122 = vunpack.c.l.b16 %v548
        %v1123 = vunpack.c.h.b16 %v548
        %v1124 = vunpack.c.l.b16 %v549
        %v1125 = vunpack.c.h.b16 %v549
        %v1126 = vunpack.c.l.b16 %v550
        %v1127 = vunpack.c.h.b16 %v550
        %v1128 = vunpack.c.l.b16 %v551
        %v1129 = vunpack.c.h.b16 %v551
        %v1130 = vunpack.c.l.b16 %v552
        %v1131 = vunpack.c.h.b16 %v552
        %v1132 = vunpack.c.l.b16 %v553
        %v1133 = vunpack.c.h.b16 %v553
        %v1134 = vunpack.c.l.b16 %v554
        %v1135 = vunpack.c.h.b16 %v554
        %v1136 = vunpack.c.l.b16 %v555
        %v1137 = vunpack.c.h.b16 %v555
        %v1138 = vunpack.c.l.b16 %v556
        %v1139 = vunpack.c.h.b16 %v556
        %v1140 = vunpack.c.l.b16 %v557
        %v1141 = vunpack.c.h.b16 %v557
        %v1142 = vunpack.c.l.b16 %v558
        %v1143 = vunpack.c.h.b16 %v558
        %v1144 = vunpack.c.l.b16 %v559
        %v1145 = vunpack.c.h.b16 %v559
        %v1146 = vunpack.c.l.b16 %v560
        %v1147 = vunpack.c.h.b16 %v560
        %v1148 = vunpack.c.l.b16 %v561
        %v1149 = vunpack.c.h.b16 %v561
        %v1150 = vunpack.c.l.b16 %v562
        %v1151 = vunpack.c.h.b16 %v562
        %v1152 = vunpack.c.l.b16 %v563
        %v1153 = vunpack.c.h.b16 %v563
        %v1154 = vunpack.c.l.b16 %v564
        %v1155 = vunpack.c.h.b16 %v564
        %v1156 = vunpack.c.l.b16 %v565
        %v1157 = vunpack.c.h.b16 %v565
        %v1158 = vunpack.c.l.b16 %v566
        %v1159 = vunpack.c.h.b16 %v566
        %v1160 = vunpack.c.l.b16 %v567
        %v1161 = vunpack.c.h.b16 %v567
        %v1162 = vunpack.c.l.b16 %v568
        %v1163 = vunpack.c.h.b16 %v568
        %v1164 = vunpack.c.l.b16 %v569
        %v1165 = vunpack.c.h.b16 %v569
        %v1166 = vunpack.c.l.b16 %v570
        %v1167 = vunpack.c.h.b16 %v570
        %v1168 = vunpack.c.l.b16 %v571
        %v1169 = vunpack.c.h.b16 %v571
        %v1170 = vunpack.c.l.b16 %v572
        %v1171 = vunpack.c.h.b16 %v572
        %v1172 = vunpack.c.l.b16 %v573
        %v1173 = vunpack.c.h.b16 %v573
        %v1174 = vunpack.c.l.b16 %v574
        %v1175 = vunpack.c.h.b16 %v574
        %v1176 = vunpack.c.l.b16 %v575
        %v1177 = vunpack.c.h.b16 %v575
        %v1178 = vunpack.c.l.b16 %v576
        %v1179 = vunpack.c.h.b16 %v576
        %v1180 = vunpack.c.l.b16 %v577
        %v1181 = vunpack.c.h.b16 %v577
        %v1182 = vunpack.c.l.b16 %v578
        %v1183 = vunpack.c.h.b16 %v578
        %v1184 = vunpack.c.l.b16 %v579
        %v1185 = vunpack.c.h.b16 %v579
        %v1186 = vunpack.c.l.b16 %v580
        %v1187 = vunpack.c.h.b16 %v580
        %v1188 = vunpack.c.l.b16 %v581
        %v1189 = vunpack.c.h.b16 %v581
        %v1190 = vunpack.c.l.b16 %v582
        %v1191 = vunpack.c.h.b16 %v582
        %v1192 = vunpack.c.l.b16 %v583
        %v1193 = vunpack.c.h.b16 %v583
        %v1194 = vunpack.c.l.b16 %v584
        %v1195 = vunpack.c.h.b16 %v584
        %v1196 = vunpack.c.l.b16 %v585
        %v1197 = vunpack.c.h.b16 %v585
        %v1198 = vunpack.c.l.b16 %v586
        %v1199 = vunpack.c.h.b16 %v586
        %v1200 = vunpack.c.l.b16 %v587
        %v1201 = vunpack.c.h.b16 %v587
        %v1202 = vunpack.c.l.b16 %v588
        %v1203 = vunpack.c.h.b16 %v588
        %v1204 = vunpack.c.l.b16 %v589
        %v1205 = vunpack.c.h.b16 %v589
        %v1206 = vunpack.c.l.b16 %v590
        %v1207 = vunpack.c.h.b16 %v590
        %v1208 = vunpack.c.l.b16 %v591
        %v1209 = vunpack.c.h.b16 %v591
        %v1210 = vunpack.c.l.b16 %v592
        %v1211 = vunpack.c.h.b16 %v592
        %v1212 = vunpack.c.l.b16 %v593
        %v1213 = vunpack.c.h.b16 %v593
        %v1214 = vunpack.c.l.b16 %v594
        %v1215 = vunpack.c.h.b16 %v594
        %v1216 = vunpack.c.l.b16 %v595
        %v1217 = vunpack.c.h.b16 %v595
        %v1218 = vunpack.c.l.b16 %v596
        %v1219 = vunpack.c.h.b16 %v596
        %v1220 = vunpack.c.l.b16 %v597
        %v1221 = vunpack.c.h.b16 %v597
        %v1222 = vunpack.c.l.b16 %v598
        %v1223 = vunpack.c.h.b16 %v598
        %v1224 = vunpack.c.l.b16 %v599
        %v1225 = vunpack.c.h.b16 %v599
        %v1226 = vunpack.c.l.b16 %v600
        %v1227 = vunpack.c.h.b16 %v600
        %v1228 = vunpack.c.l.b16 %v601
        %v1229 = vunpack.c.h.b16 %v601
        %v1230 = vunpack.c.l.b16 %v602
        %v1231 = vunpack.c.h.b16 %v602
        %v1232 = vunpack.c.l.b16 %v603
        %v1233 = vunpack.c.h.b16 %v603
        %v1234 = vunpack.c.l.b16 %v604
        %v1235 = vunpack.c.h.b16 %v604
        %v1236 = vunpack.c.l.b16 %v605
        %v1237 = vunpack.c.h.b16 %v605
        %v1238 = vunpack.c.l.b16 %v606
        %v1239 = vunpack.c.h.b16 %v606
        %v1240 = vunpack.c.l.b16 %v607
        %v1241 = vunpack.c.h.b16 %v607
        %v1242 = vunpack.c.l.b16 %v608
        %v1243 = vunpack.c.h.b16 %v608
        %v1244 = vunpack.c.l.b16 %v609
        %v1245 = vunpack.c.h.b16 %v609
        %v1246 = vunpack.c.l.b16 %v610
        %v1247 = vunpack.c.h.b16 %v610
        %v1248 = vunpack.c.l.b16 %v611
        %v1249 = vunpack.c.h.b16 %v611
        %v1250 = vunpack.c.l.b16 %v612
        %v1251 = vunpack.c.h.b16 %v612
        %v1252 = vunpack.c.l.b16 %v613
        %v1253 = vunpack.c.h.b16 %v613
        %v1254 = vunpack.c.l.b16 %v614
        %v1255 = vunpack.c.h.b16 %v614
        %v1256 = vunpack.c.l.b16 %v615
        %v1257 = vunpack.c.h.b16 %v615
        %v1258 = vunpack.c.l.b16 %v616
        %v1259 = vunpack.c.h.b16 %v616
        %v1260 = vunpack.c.l.b16 %v617
        %v1261 = vunpack.c.h.b16 %v617
        %v1262 = vunpack.c.l.b16 %v618
        %v1263 = vunpack.c.h.b16 %v618
        %v1264 = vunpack.c.l.b16 %v619
        %v1265 = vunpack.c.h.b16 %v619
        %v1266 = vunpack.c.l.b16 %v620
        %v1267 = vunpack.c.h.b16 %v620
        %v1268 = vunpack.c.l.b16 %v621
        %v1269 = vunpack.c.h.b16 %v621
        %v1270 = vunpack.c.l.b16 %v622
        %v1271 = vunpack.c.h.b16 %v622
        %v1272 = vunpack.c.l.b16 %v623
        %v1273 = vunpack.c.h.b16 %v623
        %v1274 = vunpack.c.l.b16 %v624
        %v1275 = vunpack.c.h.b16 %v624
        %v1276 = vunpack.c.l.b16 %v625
        %v1277 = vunpack.c.h.b16 %v625
        %v1278 = vunpack.c.l.b16 %v626
        %v1279 = vunpack.c.h.b16 %v626
        %v1280 = vunpack.c.l.b16 %v627
        %v1281 = vunpack.c.h.b16 %v627
        %v1282 = vunpack.c.l.b16 %v628
        %v1283 = vunpack.c.h.b16 %v628
        %v1284 = vunpack.c.l.b16 %v629
        %v1285 = vunpack.c.h.b16 %v629
        %v1286 = vunpack.c.l.b16 %v630
        %v1287 = vunpack.c.h.b16 %v630
        %v1288 = vunpack.c.l.b16 %v631
        %v1289 = vunpack.c.h.b16 %v631
        %v1290 = vunpack.c.l.b16 %v632
        %v1291 = vunpack.c.h.b16 %v632
        %v1292 = vunpack.c.l.b16 %v633
        %v1293 = vunpack.c.h.b16 %v633
        %v1294 = vunpack.c.l.b16 %v634
        %v1295 = vunpack.c.h.b16 %v634
        %v1296 = vunpack.c.l.b16 %v635
        %v1297 = vunpack.c.h.b16 %v635
        %v1298 = vunpack.c.l.b16 %v636
        %v1299 = vunpack.c.h.b16 %v636
        %v1300 = vunpack.c.l.b16 %v637
        %v1301 = vunpack.c.h.b16 %v637
        %v1302 = vunpack.c.l.b16 %v638
        %v1303 = vunpack.c.h.b16 %v638
        %v1304 = vunpack.c.l.b16 %v639
        %v1305 = vunpack.c.h.b16 %v639
        %v1306 = vunpack.c.l.b16 %v640
        %v1307 = vunpack.c.h.b16 %v640
        %v1308 = vunpack.c.l.b16 %v641
        %v1309 = vunpack.c.h.b16 %v641
        %v1310 = vunpack.c.l.b16 %v642
        %v1311 = vunpack.c.h.b16 %v642
        %v1312 = vunpack.c.l.b16 %v643
        %v1313 = vunpack.c.h.b16 %v643
        %v1314 = vunpack.c.l.b16 %v644
        %v1315 = vunpack.c.h.b16 %v644
        %v1316 = vunpack.c.l.b16 %v645
        %v1317 = vunpack.c.h.b16 %v645
        %v1318 = vunpack.c.l.b16 %v646
        %v1319 = vunpack.c.h.b16 %v646
        %v1320 = vunpack.c.l.b16 %v647
        %v1321 = vunpack.c.h.b16 %v647
        %v1322 = vunpack.c.l.b16 %v648
        %v1323 = vunpack.c.h.b16 %v648
        %v1324 = vunpack.c.l.b16 %v649
        %v1325 = vunpack.c.h.b16 %v649
        %v1326 = vunpack.c.l.b16 %v650
        %v1327 = vunpack.c.h.b16 %v650
        %v1328 = vunpack.c.l.b16 %v651
        %v1329 = vunpack.c.h.b16 %v651
        %v1330 = vunpack.c.l.b16 %v652
        %v1331 = vunpack.c.h.b16 %v652
        %v1332 = vunpack.c.l.b16 %v653
        %v1333 = vunpack.c.h.b16 %v653
        %v1334 = vunpack.c.l.b16 %v654
        %v1335 = vunpack.c.h.b16 %v654
        %v1336 = vunpack.c.l.b16 %v655
        %v1337 = vunpack.c.h.b16 %v655
        %v1338 = vunpack.c.l.b16 %v656
        %v1339 = vunpack.c.h.b16 %v656
        %v1340 = vunpack.c.l.b16 %v657
        %v1341 = vunpack.c.h.b16 %v657
        %v1342 = vunpack.c.l.b16 %v658
        %v1343 = vunpack.c.h.b16 %v658
        %v1344 = vunpack.c.l.b16 %v659
        %v1345 = vunpack.c.h.b16 %v659
        %v1346 = vunpack.c.l.b16 %v660
        %v1347 = vunpack.c.h.b16 %v660
        %v1348 = vunpack.c.l.b16 %v661
        %v1349 = vunpack.c.h.b16 %v661
        %v1350 = vunpack.c.l.b16 %v662
        %v1351 = vunpack.c.h.b16 %v662
        %v1352 = vunpack.c.l.b16 %v663
        %v1353 = vunpack.c.h.b16 %v663
        %v1354 = vunpack.c.l.b16 %v664
        %v1355 = vunpack.c.h.b16 %v664
        %v1356 = vunpack.c.l.b16 %v665
        %v1357 = vunpack.c.h.b16 %v665
        %v1358 = vunpack.c.l.b16 %v666
        %v1359 = vunpack.c.h.b16 %v666
        %v1360 = vunpack.c.l.b16 %v667
        %v1361 = vunpack.c.h.b16 %v667
        %v1362 = vunpack.c.l.b16 %v668
        %v1363 = vunpack.c.h.b16 %v668
        %v1364 = vunpack.c.l.b16 %v669
        %v1365 = vunpack.c.h.b16 %v669
        %v1366 = vunpack.c.l.b16 %v670
        %v1367 = vunpack.c.h.b16 %v670
        %v1368 = vunpack.c.l.b16 %v671
        %v1369 = vunpack.c.h.b16 %v671
        %v1370 = vunpack.c.l.b16 %v672
        %v1371 = vunpack.c.h.b16 %v672
        %v1372 = vunpack.c.l.b16 %v673
        %v1373 = vunpack.c.h.b16 %v673
        %v1374 = vunpack.c.l.b16 %v674
        %v1375 = vunpack.c.h.b16 %v674
        %v1376 = vunpack.c.l.b16 %v675
        %v1377 = vunpack.c.h.b16 %v675
        %v1378 = vunpack.c.l.b16 %v676
        %v1379 = vunpack.c.h.b16 %v676
        %v1380 = vunpack.c.l.b16 %v677
        %v1381 = vunpack.c.h.b16 %v677
        %v1382 = vunpack.c.l.b16 %v678
        %v1383 = vunpack.c.h.b16 %v678
        %v1384 = vunpack.c.l.b16 %v679
        %v1385 = vunpack.c.h.b16 %v679
        %v1386 = vunpack.c.l.b16 %v680
        %v1387 = vunpack.c.h.b16 %v680
        %v1388 = vunpack.c.l.b16 %v681
        %v1389 = vunpack.c.h.b16 %v681
        %v1390 = vunpack.c.l.b16 %v682
        %v1391 = vunpack.c.h.b16 %v682
        %v1392 = vunpack.c.l.b16 %v683
        %v1393 = vunpack.c.h.b16 %v683
        %v1394 = vunpack.c.l.b16 %v684
        %v1395 = vunpack.c.h.b16 %v684
        %v1396 = vunpack.c.l.b16 %v685
        %v1397 = vunpack.c.h.b16 %v685
        %v1398 = vunpack.c.l.b16 %v686
        %v1399 = vunpack.c.h.b16 %v686
        %v1400 = vunpack.c.l.b16 %v687
        %v1401 = vunpack.c.h.b16 %v687
        %v1402 = vunpack.c.l.b16 %v688
        %v1403 = vunpack.c.h.b16 %v688
        %v1404 = vunpack.c.l.b16 %v689
        %v1405 = vunpack.c.h.b16 %v689
        %v1406 = vunpack.c.l.b16 %v690
        %v1407 = vunpack.c.h.b16 %v690
        %v1408 = vunpack.c.l.b16 %v691
        %v1409 = vunpack.c.h.b16 %v691
        %v1410 = vunpack.c.l.b16 %v692
        %v1411 = vunpack.c.h.b16 %v692
        %v1412 = vunpack.c.l.b16 %v693
        %v1413 = vunpack.c.h.b16 %v693
        %v1414 = vunpack.c.l.b16 %v694
        %v1415 = vunpack.c.h.b16 %v694
        %v1416 = vunpack.c.l.b16 %v695
        %v1417 = vunpack.c.h.b16 %v695
        %v1418 = vunpack.c.l.b16 %v696
        %v1419 = vunpack.c.h.b16 %v696
        %v1420 = vunpack.c.l.b16 %v697
        %v1421 = vunpack.c.h.b16 %v697
        %v1422 = vunpack.c.l.b16 %v698
        %v1423 = vunpack.c.h.b16 %v698
        %v1424 = vunpack.c.l.b16 %v699
        %v1425 = vunpack.c.h.b16 %v699
        %v1426 = vunpack.c.l.b16 %v700
        %v1427 = vunpack.c.h.b16 %v700
        %v1428 = vunpack.c.l.b16 %v701
        %v1429 = vunpack.c.h.b16 %v701
        %v1430 = vunpack.c.l.b16 %v702
        %v1431 = vunpack.c.h.b16 %v702
        %v1432 = vunpack.c.l.b16 %v703
        %v1433 = vunpack.c.h.b16 %v703
        %v1434 = vunpack.c.l.b16 %v704
        %v1435 = vunpack.c.h.b16 %v704
        %v1436 = vunpack.c.l.b16 %v705
        %v1437 = vunpack.c.h.b16 %v705
        %v1438 = vunpack.c.l.b16 %v706
        %v1439 = vunpack.c.h.b16 %v706
        %v1440 = vunpack.c.l.b16 %v707
        %v1441 = vunpack.c.h.b16 %v707
        %v1442 = vunpack.c.l.b16 %v708
        %v1443 = vunpack.c.h.b16 %v708
        %v1444 = vunpack.c.l.b16 %v709
        %v1445 = vunpack.c.h.b16 %v709
        %v1446 = vunpack.c.l.b16 %v710
        %v1447 = vunpack.c.h.b16 %v710
        %v1448 = vunpack.c.l.b16 %v711
        %v1449 = vunpack.c.h.b16 %v711
        %v1450 = vunpack.c.l.b16 %v712
        %v1451 = vunpack.c.h.b16 %v712
        %v1452 = vunpack.c.l.b16 %v713
        %v1453 = vunpack.c.h.b16 %v713
        %v1454 = vunpack.c.l.b16 %v714
        %v1455 = vunpack.c.h.b16 %v714
        %v1456 = vunpack.c.l.b16 %v715
        %v1457 = vunpack.c.h.b16 %v715
        %v1458 = vunpack.c.l.b16 %v716
        %v1459 = vunpack.c.h.b16 %v716
        %v1460 = vunpack.c.l.b16 %v717
        %v1461 = vunpack.c.h.b16 %v717
        %v1462 = vunpack.c.l.b16 %v718
        %v1463 = vunpack.c.h.b16 %v718
        %v1464 = vunpack.c.l.b16 %v719
        %v1465 = vunpack.c.h.b16 %v719
        %v1466 = vunpack.c.l.b16 %v720
        %v1467 = vunpack.c.h.b16 %v720
        %v1468 = vunpack.c.l.b16 %v721
        %v1469 = vunpack.c.h.b16 %v721
        %v1470 = vunpack.c.l.b16 %v722
        %v1471 = vunpack.c.h.b16 %v722
        %v1472 = vunpack.c.l.b16 %v723
        %v1473 = vunpack.c.h.b16 %v723
        %v1474 = vunpack.c.l.b16 %v724
        %v1475 = vunpack.c.h.b16 %v724
        %v1476 = vunpack.c.l.b16 %v725
        %v1477 = vunpack.c.h.b16 %v725
        %v1478 = vunpack.c.l.b16 %v726
        %v1479 = vunpack.c.h.b16 %v726
        %v1480 = vunpack.c.l.b16 %v727
        %v1481 = vunpack.c.h.b16 %v727
        %v1482 = vunpack.c.l.b16 %v728
        %v1483 = vunpack.c.h.b16 %v728
        %v1484 = vunpack.c.l.b16 %v729
        %v1485 = vunpack.c.h.b16 %v729
        %v1486 = vunpack.c.l.b16 %v730
        %v1487 = vunpack.c.h.b16 %v730
        %v1488 = vunpack.c.l.b16 %v731
        %v1489 = vunpack.c.h.b16 %v731
        %v1490 = vunpack.c.l.b16 %v732
        %v1491 = vunpack.c.h.b16 %v732
        %v1492 = vunpack.c.l.b16 %v733
        %v1493 = vunpack.c.h.b16 %v733
        %v1494 = vunpack.c.l.b16 %v734
        %v1495 = vunpack.c.h.b16 %v734
        %v1496 = vunpack.c.l.b16 %v735
        %v1497 = vunpack.c.h.b16 %v735
        %v1498 = vunpack.c.l.b16 %v736
        %v1499 = vunpack.c.h.b16 %v736
        %v1500 = vunpack.c.l.b16 %v737
        %v1501 = vunpack.c.h.b16 %v737
        %v1502 = vunpack.c.l.b16 %v738
        %v1503 = vunpack.c.h.b16 %v738
        %v1504 = vunpack.c.l.b16 %v739
        %v1505 = vunpack.c.h.b16 %v739
        %v1506 = vunpack.c.l.b16 %v740
        %v1507 = vunpack.c.h.b16 %v740
        %v1508 = vunpack.c.l.b16 %v741
        %v1509 = vunpack.c.h.b16 %v741
        %v1510 = vunpack.c.l.b16 %v742
        %v1511 = vunpack.c.h.b16 %v742
        %v1512 = vunpack.c.l.b16 %v743
        %v1513 = vunpack.c.h.b16 %v743
        %v1514 = vunpack.c.l.b16 %v744
        %v1515 = vunpack.c.h.b16 %v744
        %v1516 = vunpack.c.l.b16 %v745
        %v1517 = vunpack.c.h.b16 %v745
        %v1518 = vunpack.c.l.b16 %v746
        %v1519 = vunpack.c.h.b16 %v746
        %v1520 = vunpack.c.l.b16 %v747
        %v1521 = vunpack.c.h.b16 %v747
        %v1522 = vunpack.c.l.b16 %v748
        %v1523 = vunpack.c.h.b16 %v748
        %v1524 = vunpack.c.l.b16 %v749
        %v1525 = vunpack.c.h.b16 %v749
        %v1526 = vunpack.c.l.b16 %v750
        %v1527 = vunpack.c.h.b16 %v750
        %v1528 = vunpack.c.l.b16 %v751
        %v1529 = vunpack.c.h.b16 %v751
        %v1530 = vunpack.c.l.b16 %v752
        %v1531 = vunpack.c.h.b16 %v752
        %v1532 = vunpack.c.l.b16 %v753
        %v1533 = vunpack.c.h.b16 %v753
        %v1534 = vunpack.c.l.b16 %v754
        %v1535 = vunpack.c.h.b16 %v754
        %v1536 = vunpack.c.l.b16 %v755
        %v1537 = vunpack.c.h.b16 %v755
        %v1538 = vunpack.c.l.b16 %v756
        %v1539 = vunpack.c.h.b16 %v756
        %v1540 = vunpack.c.l.b16 %v757
        %v1541 = vunpack.c.h.b16 %v757
        %v1542 = vunpack.c.l.b16 %v758
        %v1543 = vunpack.c.h.b16 %v758
        %v1544 = vunpack.c.l.b16 %v759
        %v1545 = vunpack.c.h.b16 %v759
        %v1546 = vunpack.c.l.b16 %v760
        %v1547 = vunpack.c.h.b16 %v760
        %v1548 = vunpack.c.l.b16 %v761
        %v1549 = vunpack.c.h.b16 %v761
        %v1550 = vunpack.c.l.b16 %v762
        %v1551 = vunpack.c.h.b16 %v762
        %v1552 = vunpack.c.l.b16 %v763
        %v1553 = vunpack.c.h.b16 %v763
        %v1554 = vunpack.c.l.b16 %v764
        %v1555 = vunpack.c.h.b16 %v764
        %v1556 = vunpack.c.l.b16 %v765
        %v1557 = vunpack.c.h.b16 %v765
        %v1558 = vunpack.c.l.b16 %v766
        %v1559 = vunpack.c.h.b16 %v766
        %v1560 = vunpack.c.l.b16 %v767
        %v1561 = vunpack.c.h.b16 %v767
        %v1562 = vunpack.c.l.b16 %v768
        %v1563 = vunpack.c.h.b16 %v768
        %v1564 = vunpack.c.l.b16 %v769
        %v1565 = vunpack.c.h.b16 %v769
        %v1566 = vunpack.c.l.b16 %v770
        %v1567 = vunpack.c.h.b16 %v770
        %v1568 = vpack.c.b16 %v1064, %v1056
        %v1569 = vpack.c.b16 %v1065, %v1057
        %v1570 = vpack.c.b16 %v1066, %v1058
        %v1571 = vpack.c.b16 %v1067, %v1059
        %v1572 = vpack.c.b16 %v1068, %v1060
        %v1573 = vpack.c.b16 %v1069, %v1061
        %v1574 = vpack.c.b16 %v1070, %v1062
        %v1575 = vpack.c.b16 %v1071, %v1063
        %v1576 = vpack.c.b16 %v1080, %v1072
        %v1577 = vpack.c.b16 %v1081, %v1073
        %v1578 = vpack.c.b16 %v1082, %v1074
        %v1579 = vpack.c.b16 %v1083, %v1075
        %v1580 = vpack.c.b16 %v1084, %v1076
        %v1581 = vpack.c.b16 %v1085, %v1077
        %v1582 = vpack.c.b16 %v1086, %v1078
        %v1583 = vpack.c.b16 %v1087, %v1079
        %v1584 = vpack.c.b16 %v1096, %v1088
        %v1585 = vpack.c.b16 %v1097, %v1089
        %v1586 = vpack.c.b16 %v1098, %v1090
        %v1587 = vpack.c.b16 %v1099, %v1091
        %v1588 = vpack.c.b16 %v1100, %v1092
        %v1589 = vpack.c.b16 %v1101, %v1093
        %v1590 = vpack.c.b16 %v1102, %v1094
        %v1591 = vpack.c.b16 %v1103, %v1095
        %v1592 = vpack.c.b16 %v1112, %v1104
        %v1593 = vpack.c.b16 %v1113, %v1105
        %v1594 = vpack.c.b16 %v1114, %v1106
        %v1595 = vpack.c.b16 %v1115, %v1107
        %v1596 = vpack.c.b16 %v1116, %v1108
        %v1597 = vpack.c.b16 %v1117, %v1109
        %v1598 = vpack.c.b16 %v1118, %v1110
        %v1599 = vpack.c.b16 %v1119, %v1111
        %v1600 = vpack.c.b16 %v1128, %v1120
        %v1601 = vpack.c.b16 %v1129, %v1121
        %v1602 = vpack.c.b16 %v1130, %v1122
        %v1603 = vpack.c.b16 %v1131, %v1123
        %v1604 = vpack.c.b16 %v1132, %v1124
        %v1605 = vpack.c.b16 %v1133, %v1125
        %v1606 = vpack.c.b16 %v1134, %v1126
        %v1607 = vpack.c.b16 %v1135, %v1127
        %v1608 = vpack.c.b16 %v1144, %v1136
        %v1609 = vpack.c.b16 %v1145, %v1137
        %v1610 = vpack.c.b16 %v1146, %v1138
        %v1611 = vpack.c.b16 %v1147, %v1139
        %v1612 = vpack.c.b16 %v1148, %v1140
        %v1613 = vpack.c.b16 %v1149, %v1141
        %v1614 = vpack.c.b16 %v1150, %v1142
        %v1615 = vpack.c.b16 %v1151, %v1143
        %v1616 = vpack.c.b16 %v1160, %v1152
        %v1617 = vpack.c.b16 %v1161, %v1153
        %v1618 = vpack.c.b16 %v1162, %v1154
        %v1619 = vpack.c.b16 %v1163, %v1155
        %v1620 = vpack.c.b16 %v1164, %v1156
        %v1621 = vpack.c.b16 %v1165, %v1157
        %v1622 = vpack.c.b16 %v1166, %v1158
        %v1623 = vpack.c.b16 %v1167, %v1159
        %v1624 = vpack.c.b16 %v1176, %v1168
        %v1625 = vpack.c.b16 %v1177, %v1169
        %v1626 = vpack.c.b16 %v1178, %v1170
        %v1627 = vpack.c.b16 %v1179, %v1171
        %v1628 = vpack.c.b16 %v1180, %v1172
        %v1629 = vpack.c.b16 %v1181, %v1173
        %v1630 = vpack.c.b16 %v1182, %v1174
        %v1631 = vpack.c.b16 %v1183, %v1175
        %v1632 = vpack.c.b16 %v1192, %v1184
        %v1633 = vpack.c.b16 %v1193, %v1185
        %v1634 = vpack.c.b16 %v1194, %v1186
        %v1635 = vpack.c.b16 %v1195, %v1187
        %v1636 = vpack.c.b16 %v1196, %v1188
        %v1637 = vpack.c.b16 %v1197, %v1189
        %v1638 = vpack.c.b16 %v1198, %v1190
        %v1639 = vpack.c.b16 %v1199, %v1191
        %v1640 = vpack.c.b16 %v1208, %v1200
        %v1641 = vpack.c.b16 %v1209, %v1201
        %v1642 = vpack.c.b16 %v1210, %v1202
        %v1643 = vpack.c.b16 %v1211, %v1203
        %v1644 = vpack.c.b16 %v1212, %v1204
        %v1645 = vpack.c.b16 %v1213, %v1205
        %v1646 = vpack.c.b16 %v1214, %v1206
        %v1647 = vpack.c.b16 %v1215, %v1207
        %v1648 = vpack.c.b16 %v1224, %v1216
        %v1649 = vpack.c.b16 %v1225, %v1217
        %v1650 = vpack.c.b16 %v1226, %v1218
        %v1651 = vpack.c.b16 %v1227, %v1219
        %v1652 = vpack.c.b16 %v1228, %v1220
        %v1653 = vpack.c.b16 %v1229, %v1221
        %v1654 = vpack.c.b16 %v1230, %v1222
        %v1655 = vpack.c.b16 %v1231, %v1223
        %v1656 = vpack.c.b16 %v1240, %v1232
        %v1657 = vpack.c.b16 %v1241, %v1233
        %v1658 = vpack.c.b16 %v1242, %v1234
        %v1659 = vpack.c.b16 %v1243, %v1235
        %v1660 = vpack.c.b16 %v1244, %v1236
        %v1661 = vpack.c.b16 %v1245, %v1237
        %v1662 = vpack.c.b16 %v1246, %v1238
        %v1663 = vpack.c.b16 %v1247, %v1239
        %v1664 = vpack.c.b16 %v1256, %v1248
        %v1665 = vpack.c.b16 %v1257, %v1249
        %v1666 = vpack.c.b16 %v1258, %v1250
        %v1667 = vpack.c.b16 %v1259, %v1251
        %v1668 = vpack.c.b16 %v1260, %v1252
        %v1669 = vpack.c.b16 %v1261, %v1253
        %v1670 = vpack.c.b16 %v1262, %v1254
        %v1671 = vpack.c.b16 %v1263, %v1255
        %v1672 = vpack.c.b16 %v1272, %v1264
        %v1673 = vpack.c.b16 %v1273, %v1265
        %v1674 = vpack.c.b16 %v1274, %v1266
        %v1675 = vpack.c.b16 %v1275, %v1267
        %v1676 = vpack.c.b16 %v1276, %v1268
        %v1677 = vpack.c.b16 %v1277, %v1269
        %v1678 = vpack.c.b16 %v1278, %v1270
        %v1679 = vpack.c.b16 %v1279, %v1271
        %v1680 = vpack.c.b16 %v1288, %v1280
        %v1681 = vpack.c.b16 %v1289, %v1281
        %v1682 = vpack.c.b16 %v1290, %v1282
        %v1683 = vpack.c.b16 %v1291, %v1283
        %v1684 = vpack.c.b16 %v1292, %v1284
        %v1685 = vpack.c.b16 %v1293, %v1285
        %v1686 = vpack.c.b16 %v1294, %v1286
        %v1687 = vpack.c.b16 %v1295, %v1287
        %v1688 = vpack.c.b16 %v1304, %v1296
        %v1689 = vpack.c.b16 %v1305, %v1297
        %v1690 = vpack.c.b16 %v1306, %v1298
        %v1691 = vpack.c.b16 %v1307, %v1299
        %v1692 = vpack.c.b16 %v1308, %v1300
        %v1693 = vpack.c.b16 %v1309, %v1301
        %v1694 = vpack.c.b16 %v1310, %v1302
        %v1695 = vpack.c.b16 %v1311, %v1303
        %v1696 = vpack.c.b16 %v1320, %v1312
        %v1697 = vpack.c.b16 %v1321, %v1313
        %v1698 = vpack.c.b16 %v1322, %v1314
        %v1699 = vpack.c.b16 %v1323, %v1315
        %v1700 = vpack.c.b16 %v1324, %v1316
        %v1701 = vpack.c.b16 %v1325, %v1317
        %v1702 = vpack.c.b16 %v1326, %v1318
        %v1703 = vpack.c.b16 %v1327, %v1319
        %v1704 = vpack.c.b16 %v1336, %v1328
        %v1705 = vpack.c.b16 %v1337, %v1329
        %v1706 = vpack.c.b16 %v1338, %v1330
        %v1707 = vpack.c.b16 %v1339, %v1331
        %v1708 = vpack.c.b16 %v1340, %v1332
        %v1709 = vpack.c.b16 %v1341, %v1333
        %v1710 = vpack.c.b16 %v1342, %v1334
        %v1711 = vpack.c.b16 %v1343, %v1335
        %v1712 = vpack.c.b16 %v1352, %v1344
        %v1713 = vpack.c.b16 %v1353, %v1345
        %v1714 = vpack.c.b16 %v1354, %v1346
        %v1715 = vpack.c.b16 %v1355, %v1347
        %v1716 = vpack.c.b16 %v1356, %v1348
        %v1717 = vpack.c.b16 %v1357, %v1349
        %v1718 = vpack.c.b16 %v1358, %v1350
        %v1719 = vpack.c.b16 %v1359, %v1351
        %v1720 = vpack.c.b16 %v1368, %v1360
        %v1721 = vpack.c.b16 %v1369, %v1361
        %v1722 = vpack.c.b16 %v1370, %v1362
        %v1723 = vpack.c.b16 %v1371, %v1363
        %v1724 = vpack.c.b16 %v1372, %v1364
        %v1725 = vpack.c.b16 %v1373, %v1365
        %v1726 = vpack.c.b16 %v1374, %v1366
        %v1727 = vpack.c.b16 %v1375, %v1367
        %v1728 = vpack.c.b16 %v1384, %v1376
        %v1729 = vpack.c.b16 %v1385, %v1377
        %v1730 = vpack.c.b16 %v1386, %v1378
        %v1731 = vpack.c.b16 %v1387, %v1379
        %v1732 = vpack.c.b16 %v1388, %v1380
        %v1733 = vpack.c.b16 %v1389, %v1381
        %v1734 = vpack.c.b16 %v1390, %v1382
        %v1735 = vpack.c.b16 %v1391, %v1383
        %v1736 = vpack.c.b16 %v1400, %v1392
        %v1737 = vpack.c.b16 %v1401, %v1393
        %v1738 = vpack.c.b16 %v1402, %v1394
        %v1739 = vpack.c.b16 %v1403, %v1395
        %v1740 = vpack.c.b16 %v1404, %v1396
        %v1741 = vpack.c.b16 %v1405, %v1397
        %v1742 = vpack.c.b16 %v1406, %v1398
        %v1743 = vpack.c.b16 %v1407, %v1399
        %v1744 = vpack.c.b16 %v1416, %v1408
        %v1745 = vpack.c.b16 %v1417, %v1409
        %v1746 = vpack.c.b16 %v1418, %v1410
        %v1747 = vpack.c.b16 %v1419, %v1411
        %v1748 = vpack.c.b16 %v1420, %v1412
        %v1749 = vpack.c.b16 %v1421, %v1413
        %v1750 = vpack.c.b16 %v1422, %v1414
        %v1751 = vpack.c.b16 %v1423, %v1415
        %v1752 = vpack.c.b16 %v1432, %v1424
        %v1753 = vpack.c.b16 %v1433, %v1425
        %v1754 = vpack.c.b16 %v1434, %v1426
        %v1755 = vpack.c.b16 %v1435, %v1427
        %v1756 = vpack.c.b16 %v1436, %v1428
        %v1757 = vpack.c.b16 %v1437, %v1429
        %v1758 = vpack.c.b16 %v1438, %v1430
        %v1759 = vpack.c.b16 %v1439, %v1431
        %v1760 = vpack.c.b16 %v1448, %v1440
        %v1761 = vpack.c.b16 %v1449, %v1441
        %v1762 = vpack.c.b16 %v1450, %v1442
        %v1763 = vpack.c.b16 %v1451, %v1443
        %v1764 = vpack.c.b16 %v1452, %v1444
        %v1765 = vpack.c.b16 %v1453, %v1445
        %v1766 = vpack.c.b16 %v1454, %v1446
        %v1767 = vpack.c.b16 %v1455, %v1447
        %v1768 = vpack.c.b16 %v1464, %v1456
        %v1769 = vpack.c.b16 %v1465, %v1457
        %v1770 = vpack.c.b16 %v1466, %v1458
        %v1771 = vpack.c.b16 %v1467, %v1459
        %v1772 = vpack.c.b16 %v1468, %v1460
        %v1773 = vpack.c.b16 %v1469, %v1461
        %v1774 = vpack.c.b16 %v1470, %v1462
        %v1775 = vpack.c.b16 %v1471, %v1463
        %v1776 = vpack.c.b16 %v1480, %v1472
        %v1777 = vpack.c.b16 %v1481, %v1473
        %v1778 = vpack.c.b16 %v1482, %v1474
        %v1779 = vpack.c.b16 %v1483, %v1475
        %v1780 = vpack.c.b16 %v1484, %v1476
        %v1781 = vpack.c.b16 %v1485, %v1477
        %v1782 = vpack.c.b16 %v1486, %v1478
        %v1783 = vpack.c.b16 %v1487, %v1479
        %v1784 = vpack.c.b16 %v1496, %v1488
        %v1785 = vpack.c.b16 %v1497, %v1489
        %v1786 = vpack.c.b16 %v1498, %v1490
        %v1787 = vpack.c.b16 %v1499, %v1491
        %v1788 = vpack.c.b16 %v1500, %v1492
        %v1789 = vpack.c.b16 %v1501, %v1493
        %v1790 = vpack.c.b16 %v1502, %v1494
        %v1791 = vpack.c.b16 %v1503, %v1495
        %v1792 = vpack.c.b16 %v1512, %v1504
        %v1793 = vpack.c.b16 %v1513, %v1505
        %v1794 = vpack.c.b16 %v1514, %v1506
        %v1795 = vpack.c.b16 %v1515, %v1507
        %v1796 = vpack.c.b16 %v1516, %v1508
        %v1797 = vpack.c.b16 %v1517, %v1509
        %v1798 = vpack.c.b16 %v1518, %v1510
        %v1799 = vpack.c.b16 %v1519, %v1511
        %v1800 = vpack.c.b16 %v1528, %v1520
        %v1801 = vpack.c.b16 %v1529, %v1521
        %v1802 = vpack.c.b16 %v1530, %v1522
        %v1803 = vpack.c.b16 %v1531, %v1523
        %v1804 = vpack.c.b16 %v1532, %v1524
        %v1805 = vpack.c.b16 %v1533, %v1525
        %v1806 = vpack.c.b16 %v1534, %v1526
        %v1807 = vpack.c.b16 %v1535, %v1527
        %v1808 = vpack.c.b16 %v1544, %v1536
        %v1809 = vpack.c.b16 %v1545, %v1537
        %v1810 = vpack.c.b16 %v1546, %v1538
        %v1811 = vpack.c.b16 %v1547, %v1539
        %v1812 = vpack.c.b16 %v1548, %v1540
        %v1813 = vpack.c.b16 %v1549, %v1541
        %v1814 = vpack.c.b16 %v1550, %v1542
        %v1815 = vpack.c.b16 %v1551, %v1543
        %v1816 = vpack.c.b16 %v1560, %v1552
        %v1817 = vpack.c.b16 %v1561, %v1553
        %v1818 = vpack.c.b16 %v1562, %v1554
        %v1819 = vpack.c.b16 %v1563, %v1555
        %v1820 = vpack.c.b16 %v1564, %v1556
        %v1821 = vpack.c.b16 %v1565, %v1557
        %v1822 = vpack.c.b16 %v1566, %v1558
        %v1823 = vpack.c.b16 %v1567, %v1559
        %2080 = vmatprep.subr.bf16.mxu0 %v1625
        %2081 = vmatpush1.bf16.msra.mxu0 %v1624
        %2082 = vmatprep.subr.bf16.mxu0 %v1617
        %2083 = vmatpush1.bf16.msra.mxu0 %v1616
        %2084 = vmatprep.subr.bf16.mxu0 %v1609
        %2085 = vmatpush1.bf16.msra.mxu0 %v1608
        %2086 = vmatprep.subr.bf16.mxu0 %v1601
        %2087 = vmatpush1.bf16.msra.mxu0 %v1600
        %2088 = vmatprep.subr.bf16.mxu0 %v1593
        %2089 = vmatpush1.bf16.msra.mxu0 %v1592
        %2090 = vmatprep.subr.bf16.mxu0 %v1585
        %2091 = vmatpush1.bf16.msra.mxu0 %v1584
        %2092 = vmatprep.subr.bf16.mxu0 %v1577
        %2093 = vmatpush1.bf16.msra.mxu0 %v1576
        %2094 = vmatprep.subr.bf16.mxu0 %v1569
        %2095 = vmatpush1.bf16.msra.mxu0 %v1568
        %2096 = vmatprep.subr.bf16.mxu0 %v1689
        %2097 = vmatpush2.bf16.msra.mxu0 %v1688
        %2098 = vmatprep.subr.bf16.mxu0 %v1681
        %2099 = vmatpush2.bf16.msra.mxu0 %v1680
        %2100 = vmatprep.subr.bf16.mxu0 %v1673
        %2101 = vmatpush2.bf16.msra.mxu0 %v1672
        %2102 = vmatprep.subr.bf16.mxu0 %v1665
        %2103 = vmatpush2.bf16.msra.mxu0 %v1664
        %2104 = vmatprep.subr.bf16.mxu0 %v1657
        %2105 = vmatpush2.bf16.msra.mxu0 %v1656
        %2106 = vmatprep.subr.bf16.mxu0 %v1649
        %2107 = vmatpush2.bf16.msra.mxu0 %v1648
        %2108 = vmatprep.subr.bf16.mxu0 %v1641
        %2109 = vmatpush2.bf16.msra.mxu0 %v1640
        %2110 = vmatprep.subr.bf16.mxu0 %v1633
        %2111 = vmatpush2.bf16.msra.mxu0 %v1632
        %2112 = vmatprep.mubr.bf16.mxu0 %v793
        %2113 = vmatmul.mubr.bf16.gmra.mxu0 %v792
        %v2114 = vpop.f32.mrf.mxu0
        %v2115 = vadd.f32 0.0, %v2114
        %v2116 = vpop.f32.mrf.mxu0
        %v2117 = vadd.f32 0.0, %v2116
        %v2118 = vpop.f32.mrf.mxu0
        %v2119 = vpop.f32.mrf.mxu0
        %2120 = vdwg.mxu0
        %2121 = vmatprep.subr.bf16.mxu0 %v1753
        %2122 = vmatpush1.bf16.msra.mxu0 %v1752
        %2123 = vmatprep.subr.bf16.mxu0 %v1745
        %2124 = vmatpush1.bf16.msra.mxu0 %v1744
        %2125 = vmatprep.subr.bf16.mxu0 %v1737
        %2126 = vmatpush1.bf16.msra.mxu0 %v1736
        %2127 = vmatprep.subr.bf16.mxu0 %v1729
        %2128 = vmatpush1.bf16.msra.mxu0 %v1728
        %2129 = vmatprep.subr.bf16.mxu0 %v1721
        %2130 = vmatpush1.bf16.msra.mxu0 %v1720
        %2131 = vmatprep.subr.bf16.mxu0 %v1713
        %2132 = vmatpush1.bf16.msra.mxu0 %v1712
        %2133 = vmatprep.subr.bf16.mxu0 %v1705
        %2134 = vmatpush1.bf16.msra.mxu0 %v1704
        %2135 = vmatprep.subr.bf16.mxu0 %v1697
        %2136 = vmatpush1.bf16.msra.mxu0 %v1696
        %2137 = vmatprep.subr.bf16.mxu0 %v1817
        %2138 = vmatpush2.bf16.msra.mxu0 %v1816
        %2139 = vmatprep.subr.bf16.mxu0 %v1809
        %2140 = vmatpush2.bf16.msra.mxu0 %v1808
        %2141 = vmatprep.subr.bf16.mxu0 %v1801
        %2142 = vmatpush2.bf16.msra.mxu0 %v1800
        %2143 = vmatprep.subr.bf16.mxu0 %v1793
        %2144 = vmatpush2.bf16.msra.mxu0 %v1792
        %2145 = vmatprep.subr.bf16.mxu0 %v1785
        %2146 = vmatpush2.bf16.msra.mxu0 %v1784
        %2147 = vmatprep.subr.bf16.mxu0 %v1777
        %2148 = vmatpush2.bf16.msra.mxu0 %v1776
        %2149 = vmatprep.subr.bf16.mxu0 %v1769
        %2150 = vmatpush2.bf16.msra.mxu0 %v1768
        %2151 = vmatprep.subr.bf16.mxu0 %v1761
        %2152 = vmatpush2.bf16.msra.mxu0 %v1760
        %2153 = vmatprep.mubr.bf16.mxu0 %v795
        %2154 = vmatmul.mubr.bf16.gmra.mxu0 %v794
        %v2155 = vpop.f32.mrf.mxu0
        %v2156 = vadd.f32 %v2115, %v2155
        %v2157 = vpop.f32.mrf.mxu0
        %v2158 = vadd.f32 %v2117, %v2157
        %v2159 = vpop.f32.mrf.mxu0
        %v2160 = vpop.f32.mrf.mxu0
        %2161 = vdwg.mxu0
        %2162 = vmatprep.subr.bf16.mxu0 %v1627
        %2163 = vmatpush1.bf16.msra.mxu0 %v1626
        %2164 = vmatprep.subr.bf16.mxu0 %v1619
        %2165 = vmatpush1.bf16.msra.mxu0 %v1618
        %2166 = vmatprep.subr.bf16.mxu0 %v1611
        %2167 = vmatpush1.bf16.msra.mxu0 %v1610
        %2168 = vmatprep.subr.bf16.mxu0 %v1603
        %2169 = vmatpush1.bf16.msra.mxu0 %v1602
        %2170 = vmatprep.subr.bf16.mxu0 %v1595
        %2171 = vmatpush1.bf16.msra.mxu0 %v1594
        %2172 = vmatprep.subr.bf16.mxu0 %v1587
        %2173 = vmatpush1.bf16.msra.mxu0 %v1586
        %2174 = vmatprep.subr.bf16.mxu0 %v1579
        %2175 = vmatpush1.bf16.msra.mxu0 %v1578
        %2176 = vmatprep.subr.bf16.mxu0 %v1571
        %2177 = vmatpush1.bf16.msra.mxu0 %v1570
        %2178 = vmatprep.subr.bf16.mxu0 %v1691
        %2179 = vmatpush2.bf16.msra.mxu0 %v1690
        %2180 = vmatprep.subr.bf16.mxu0 %v1683
        %2181 = vmatpush2.bf16.msra.mxu0 %v1682
        %2182 = vmatprep.subr.bf16.mxu0 %v1675
        %2183 = vmatpush2.bf16.msra.mxu0 %v1674
        %2184 = vmatprep.subr.bf16.mxu0 %v1667
        %2185 = vmatpush2.bf16.msra.mxu0 %v1666
        %2186 = vmatprep.subr.bf16.mxu0 %v1659
        %2187 = vmatpush2.bf16.msra.mxu0 %v1658
        %2188 = vmatprep.subr.bf16.mxu0 %v1651
        %2189 = vmatpush2.bf16.msra.mxu0 %v1650
        %2190 = vmatprep.subr.bf16.mxu0 %v1643
        %2191 = vmatpush2.bf16.msra.mxu0 %v1642
        %2192 = vmatprep.subr.bf16.mxu0 %v1635
        %2193 = vmatpush2.bf16.msra.mxu0 %v1634
        %2194 = vmatprep.mubr.bf16.mxu0 %v793
        %2195 = vmatmul.mubr.bf16.gmra.mxu0 %v792
        %v2196 = vpop.f32.mrf.mxu0
        %v2197 = vadd.f32 0.0, %v2196
        %v2198 = vpop.f32.mrf.mxu0
        %v2199 = vadd.f32 0.0, %v2198
        %v2200 = vpop.f32.mrf.mxu0
        %v2201 = vpop.f32.mrf.mxu0
        %2202 = vdwg.mxu0
        %2203 = vmatprep.subr.bf16.mxu0 %v1755
        %2204 = vmatpush1.bf16.msra.mxu0 %v1754
        %2205 = vmatprep.subr.bf16.mxu0 %v1747
        %2206 = vmatpush1.bf16.msra.mxu0 %v1746
        %2207 = vmatprep.subr.bf16.mxu0 %v1739
        %2208 = vmatpush1.bf16.msra.mxu0 %v1738
        %2209 = vmatprep.subr.bf16.mxu0 %v1731
        %2210 = vmatpush1.bf16.msra.mxu0 %v1730
        %2211 = vmatprep.subr.bf16.mxu0 %v1723
        %2212 = vmatpush1.bf16.msra.mxu0 %v1722
        %2213 = vmatprep.subr.bf16.mxu0 %v1715
        %2214 = vmatpush1.bf16.msra.mxu0 %v1714
        %2215 = vmatprep.subr.bf16.mxu0 %v1707
        %2216 = vmatpush1.bf16.msra.mxu0 %v1706
        %2217 = vmatprep.subr.bf16.mxu0 %v1699
        %2218 = vmatpush1.bf16.msra.mxu0 %v1698
        %2219 = vmatprep.subr.bf16.mxu0 %v1819
        %2220 = vmatpush2.bf16.msra.mxu0 %v1818
        %2221 = vmatprep.subr.bf16.mxu0 %v1811
        %2222 = vmatpush2.bf16.msra.mxu0 %v1810
        %2223 = vmatprep.subr.bf16.mxu0 %v1803
        %2224 = vmatpush2.bf16.msra.mxu0 %v1802
        %2225 = vmatprep.subr.bf16.mxu0 %v1795
        %2226 = vmatpush2.bf16.msra.mxu0 %v1794
        %2227 = vmatprep.subr.bf16.mxu0 %v1787
        %2228 = vmatpush2.bf16.msra.mxu0 %v1786
        %2229 = vmatprep.subr.bf16.mxu0 %v1779
        %2230 = vmatpush2.bf16.msra.mxu0 %v1778
        %2231 = vmatprep.subr.bf16.mxu0 %v1771
        %2232 = vmatpush2.bf16.msra.mxu0 %v1770
        %2233 = vmatprep.subr.bf16.mxu0 %v1763
        %2234 = vmatpush2.bf16.msra.mxu0 %v1762
        %2235 = vmatprep.mubr.bf16.mxu0 %v795
        %2236 = vmatmul.mubr.bf16.gmra.mxu0 %v794
        %v2237 = vpop.f32.mrf.mxu0
        %v2238 = vadd.f32 %v2197, %v2237
        %v2239 = vpop.f32.mrf.mxu0
        %v2240 = vadd.f32 %v2199, %v2239
        %v2241 = vpop.f32.mrf.mxu0
        %v2242 = vpop.f32.mrf.mxu0
        %2243 = vdwg.mxu0
        %2244 = vmatprep.subr.bf16.mxu0 %v1629
        %2245 = vmatpush1.bf16.msra.mxu0 %v1628
        %2246 = vmatprep.subr.bf16.mxu0 %v1621
        %2247 = vmatpush1.bf16.msra.mxu0 %v1620
        %2248 = vmatprep.subr.bf16.mxu0 %v1613
        %2249 = vmatpush1.bf16.msra.mxu0 %v1612
        %2250 = vmatprep.subr.bf16.mxu0 %v1605
        %2251 = vmatpush1.bf16.msra.mxu0 %v1604
        %2252 = vmatprep.subr.bf16.mxu0 %v1597
        %2253 = vmatpush1.bf16.msra.mxu0 %v1596
        %2254 = vmatprep.subr.bf16.mxu0 %v1589
        %2255 = vmatpush1.bf16.msra.mxu0 %v1588
        %2256 = vmatprep.subr.bf16.mxu0 %v1581
        %2257 = vmatpush1.bf16.msra.mxu0 %v1580
        %2258 = vmatprep.subr.bf16.mxu0 %v1573
        %2259 = vmatpush1.bf16.msra.mxu0 %v1572
        %2260 = vmatprep.subr.bf16.mxu0 %v1693
        %2261 = vmatpush2.bf16.msra.mxu0 %v1692
        %2262 = vmatprep.subr.bf16.mxu0 %v1685
        %2263 = vmatpush2.bf16.msra.mxu0 %v1684
        %2264 = vmatprep.subr.bf16.mxu0 %v1677
        %2265 = vmatpush2.bf16.msra.mxu0 %v1676
        %2266 = vmatprep.subr.bf16.mxu0 %v1669
        %2267 = vmatpush2.bf16.msra.mxu0 %v1668
        %2268 = vmatprep.subr.bf16.mxu0 %v1661
        %2269 = vmatpush2.bf16.msra.mxu0 %v1660
        %2270 = vmatprep.subr.bf16.mxu0 %v1653
        %2271 = vmatpush2.bf16.msra.mxu0 %v1652
        %2272 = vmatprep.subr.bf16.mxu0 %v1645
        %2273 = vmatpush2.bf16.msra.mxu0 %v1644
        %2274 = vmatprep.subr.bf16.mxu0 %v1637
        %2275 = vmatpush2.bf16.msra.mxu0 %v1636
        %2276 = vmatprep.mubr.bf16.mxu0 %v793
        %2277 = vmatmul.mubr.bf16.gmra.mxu0 %v792
        %v2278 = vpop.f32.mrf.mxu0
        %v2279 = vadd.f32 0.0, %v2278
        %v2280 = vpop.f32.mrf.mxu0
        %v2281 = vadd.f32 0.0, %v2280
        %v2282 = vpop.f32.mrf.mxu0
        %v2283 = vpop.f32.mrf.mxu0
        %2284 = vdwg.mxu0
        %2285 = vmatprep.subr.bf16.mxu0 %v1757
        %2286 = vmatpush1.bf16.msra.mxu0 %v1756
        %2287 = vmatprep.subr.bf16.mxu0 %v1749
        %2288 = vmatpush1.bf16.msra.mxu0 %v1748
        %2289 = vmatprep.subr.bf16.mxu0 %v1741
        %2290 = vmatpush1.bf16.msra.mxu0 %v1740
        %2291 = vmatprep.subr.bf16.mxu0 %v1733
        %2292 = vmatpush1.bf16.msra.mxu0 %v1732
        %2293 = vmatprep.subr.bf16.mxu0 %v1725
        %2294 = vmatpush1.bf16.msra.mxu0 %v1724
        %2295 = vmatprep.subr.bf16.mxu0 %v1717
        %2296 = vmatpush1.bf16.msra.mxu0 %v1716
        %2297 = vmatprep.subr.bf16.mxu0 %v1709
        %2298 = vmatpush1.bf16.msra.mxu0 %v1708
        %2299 = vmatprep.subr.bf16.mxu0 %v1701
        %2300 = vmatpush1.bf16.msra.mxu0 %v1700
        %2301 = vmatprep.subr.bf16.mxu0 %v1821
        %2302 = vmatpush2.bf16.msra.mxu0 %v1820
        %2303 = vmatprep.subr.bf16.mxu0 %v1813
        %2304 = vmatpush2.bf16.msra.mxu0 %v1812
        %2305 = vmatprep.subr.bf16.mxu0 %v1805
        %2306 = vmatpush2.bf16.msra.mxu0 %v1804
        %2307 = vmatprep.subr.bf16.mxu0 %v1797
        %2308 = vmatpush2.bf16.msra.mxu0 %v1796
        %2309 = vmatprep.subr.bf16.mxu0 %v1789
        %2310 = vmatpush2.bf16.msra.mxu0 %v1788
        %2311 = vmatprep.subr.bf16.mxu0 %v1781
        %2312 = vmatpush2.bf16.msra.mxu0 %v1780
        %2313 = vmatprep.subr.bf16.mxu0 %v1773
        %2314 = vmatpush2.bf16.msra.mxu0 %v1772
        %2315 = vmatprep.subr.bf16.mxu0 %v1765
        %2316 = vmatpush2.bf16.msra.mxu0 %v1764
        %2317 = vmatprep.mubr.bf16.mxu0 %v795
        %2318 = vmatmul.mubr.bf16.gmra.mxu0 %v794
        %v2319 = vpop.f32.mrf.mxu0
        %v2320 = vadd.f32 %v2279, %v2319
        %v2321 = vpop.f32.mrf.mxu0
        %v2322 = vadd.f32 %v2281, %v2321
        %v2323 = vpop.f32.mrf.mxu0
        %v2324 = vpop.f32.mrf.mxu0
        %2325 = vdwg.mxu0
        %2326 = vmatprep.subr.bf16.mxu0 %v1631
        %2327 = vmatpush1.bf16.msra.mxu0 %v1630
        %2328 = vmatprep.subr.bf16.mxu0 %v1623
        %2329 = vmatpush1.bf16.msra.mxu0 %v1622
        %2330 = vmatprep.subr.bf16.mxu0 %v1615
        %2331 = vmatpush1.bf16.msra.mxu0 %v1614
        %2332 = vmatprep.subr.bf16.mxu0 %v1607
        %2333 = vmatpush1.bf16.msra.mxu0 %v1606
        %2334 = vmatprep.subr.bf16.mxu0 %v1599
        %2335 = vmatpush1.bf16.msra.mxu0 %v1598
        %2336 = vmatprep.subr.bf16.mxu0 %v1591
        %2337 = vmatpush1.bf16.msra.mxu0 %v1590
        %2338 = vmatprep.subr.bf16.mxu0 %v1583
        %2339 = vmatpush1.bf16.msra.mxu0 %v1582
        %2340 = vmatprep.subr.bf16.mxu0 %v1575
        %2341 = vmatpush1.bf16.msra.mxu0 %v1574
        %2342 = vmatprep.subr.bf16.mxu0 %v1695
        %2343 = vmatpush2.bf16.msra.mxu0 %v1694
        %2344 = vmatprep.subr.bf16.mxu0 %v1687
        %2345 = vmatpush2.bf16.msra.mxu0 %v1686
        %2346 = vmatprep.subr.bf16.mxu0 %v1679
        %2347 = vmatpush2.bf16.msra.mxu0 %v1678
        %2348 = vmatprep.subr.bf16.mxu0 %v1671
        %2349 = vmatpush2.bf16.msra.mxu0 %v1670
        %2350 = vmatprep.subr.bf16.mxu0 %v1663
        %2351 = vmatpush2.bf16.msra.mxu0 %v1662
        %2352 = vmatprep.subr.bf16.mxu0 %v1655
        %2353 = vmatpush2.bf16.msra.mxu0 %v1654
        %2354 = vmatprep.subr.bf16.mxu0 %v1647
        %2355 = vmatpush2.bf16.msra.mxu0 %v1646
        %2356 = vmatprep.subr.bf16.mxu0 %v1639
        %2357 = vmatpush2.bf16.msra.mxu0 %v1638
        %2358 = vmatprep.mubr.bf16.mxu0 %v793
        %2359 = vmatmul.mubr.bf16.gmra.mxu0 %v792
        %v2360 = vpop.f32.mrf.mxu0
        %v2361 = vadd.f32 0.0, %v2360
        %v2362 = vpop.f32.mrf.mxu0
        %v2363 = vadd.f32 0.0, %v2362
        %v2364 = vpop.f32.mrf.mxu0
        %v2365 = vpop.f32.mrf.mxu0
        %2366 = vdwg.mxu0
        %2367 = vmatprep.subr.bf16.mxu0 %v1759
        %2368 = vmatpush1.bf16.msra.mxu0 %v1758
        %2369 = vmatprep.subr.bf16.mxu0 %v1751
        %2370 = vmatpush1.bf16.msra.mxu0 %v1750
        %2371 = vmatprep.subr.bf16.mxu0 %v1743
        %2372 = vmatpush1.bf16.msra.mxu0 %v1742
        %2373 = vmatprep.subr.bf16.mxu0 %v1735
        %2374 = vmatpush1.bf16.msra.mxu0 %v1734
        %2375 = vmatprep.subr.bf16.mxu0 %v1727
        %2376 = vmatpush1.bf16.msra.mxu0 %v1726
        %2377 = vmatprep.subr.bf16.mxu0 %v1719
        %2378 = vmatpush1.bf16.msra.mxu0 %v1718
        %2379 = vmatprep.subr.bf16.mxu0 %v1711
        %2380 = vmatpush1.bf16.msra.mxu0 %v1710
        %2381 = vmatprep.subr.bf16.mxu0 %v1703
        %2382 = vmatpush1.bf16.msra.mxu0 %v1702
        %2383 = vmatprep.subr.bf16.mxu0 %v1823
        %2384 = vmatpush2.bf16.msra.mxu0 %v1822
        %2385 = vmatprep.subr.bf16.mxu0 %v1815
        %2386 = vmatpush2.bf16.msra.mxu0 %v1814
        %2387 = vmatprep.subr.bf16.mxu0 %v1807
        %2388 = vmatpush2.bf16.msra.mxu0 %v1806
        %2389 = vmatprep.subr.bf16.mxu0 %v1799
        %2390 = vmatpush2.bf16.msra.mxu0 %v1798
        %2391 = vmatprep.subr.bf16.mxu0 %v1791
        %2392 = vmatpush2.bf16.msra.mxu0 %v1790
        %2393 = vmatprep.subr.bf16.mxu0 %v1783
        %2394 = vmatpush2.bf16.msra.mxu0 %v1782
        %2395 = vmatprep.subr.bf16.mxu0 %v1775
        %2396 = vmatpush2.bf16.msra.mxu0 %v1774
        %2397 = vmatprep.subr.bf16.mxu0 %v1767
        %2398 = vmatpush2.bf16.msra.mxu0 %v1766
        %2399 = vmatprep.mubr.bf16.mxu0 %v795
        %2400 = vmatmul.mubr.bf16.gmra.mxu0 %v794
        %v2401 = vpop.f32.mrf.mxu0
        %v2402 = vadd.f32 %v2361, %v2401
        %v2403 = vpop.f32.mrf.mxu0
        %v2404 = vadd.f32 %v2363, %v2403
        %v2405 = vpop.f32.mrf.mxu0
        %v2406 = vpop.f32.mrf.mxu0
        %2407 = vdwg.mxu0
        %v2416 = vcombine.low %v2156, %v2158
        %v2417 = vcombine.low %v2238, %v2240
        %v2419 = vunpack.c.l.s4 1983009808
        %v2420 = vunpack.c.0.s8 %v2419
        %v2421 = vlaneseq
        %v2422 = vshrl.u32 %v2421, 7
        %v2423 = vsub.s32 %v2420, %v2422
        %v2424 = vrot.slane %v2416, %v2423
        %v2426 = vunpack.c.l.s4 1983009808
        %v2427 = vunpack.c.0.s8 %v2426
        %v2428 = vlaneseq
        %v2429 = vshrl.u32 %v2428, 7
        %v2430 = vsub.s32 %v2427, %v2429
        %v2431 = vrot.slane %v2417, %v2430
        %v2432 = vcombine.low %v2424, %v2431
        %v2433 = vcombine.low %v2320, %v2322
        %v2434 = vcombine.low %v2402, %v2404
        %v2436 = vunpack.c.l.s4 1983009808
        %v2437 = vunpack.c.0.s8 %v2436
        %v2438 = vlaneseq
        %v2439 = vshrl.u32 %v2438, 7
        %v2440 = vsub.s32 %v2437, %v2439
        %v2441 = vrot.slane %v2433, %v2440
        %v2443 = vunpack.c.l.s4 1983009808
        %v2444 = vunpack.c.0.s8 %v2443
        %v2445 = vlaneseq
        %v2446 = vshrl.u32 %v2445, 7
        %v2447 = vsub.s32 %v2444, %v2446
        %v2448 = vrot.slane %v2434, %v2447
        %v2449 = vcombine.low %v2441, %v2448
        %v2452 = vadd.f32 %v513, %v2432
        %v2453 = vadd.f32 %v514, %v2449
        %2454 = vst [vmem:[#allocation2] sm:$0xff] %v2452
        %2455 = vst [vmem:[#allocation2 + $0x8] sm:$0xff] %v2453
        %p2456 = scmp.eq.s32.totalorder %s24, 3
        // Predicated region
        $region61: #{tpu_custom_call.1} parent=39 // pred_check
          %p2457 = pneg %p2456
        $region62: #{tpu_custom_call.1} parent=39 // pred_check_branch
          %2459 = sbr.rel (%p2457) target = $region64
        $region63: #{tpu_custom_call.1} parent=39 // pred_region
          %v2460 = vld [vmem:[#allocation2] sm:$0xff]
          %v2461 = vld [vmem:[#allocation2 + $0x8] sm:$0xff]
          %v2462 = vld [vmem:[#allocation8] sm:$0xff]
          %v2464 = vlaneseq
          %v2465 = vshrl.u32 %v2464, 7
          %v2466 = vsub.s32 0, %v2465
          %v2467 = vrot.slane %v2462, %v2466
          %v2468 = vlaneseq
          %v2469 = vshrl.u32 %v2468, 7
          %v2470 = vsub.s32 1, %v2469
          %v2471 = vrot.slane %v2462, %v2470
          %v2472 = vlaneseq
          %v2473 = vshrl.u32 %v2472, 7
          %v2474 = vsub.s32 2, %v2473
          %v2475 = vrot.slane %v2462, %v2474
          %v2476 = vlaneseq
          %v2477 = vshrl.u32 %v2476, 7
          %v2478 = vsub.s32 3, %v2477
          %v2479 = vrot.slane %v2462, %v2478
          %v2480 = vlaneseq
          %v2481 = vshrl.u32 %v2480, 7
          %v2482 = vsub.s32 4, %v2481
          %v2483 = vrot.slane %v2462, %v2482
          %v2484 = vlaneseq
          %v2485 = vshrl.u32 %v2484, 7
          %v2486 = vsub.s32 5, %v2485
          %v2487 = vrot.slane %v2462, %v2486
          %v2488 = vlaneseq
          %v2489 = vshrl.u32 %v2488, 7
          %v2490 = vsub.s32 6, %v2489
          %v2491 = vrot.slane %v2462, %v2490
          %v2492 = vlaneseq
          %v2493 = vshrl.u32 %v2492, 7
          %v2494 = vsub.s32 7, %v2493
          %v2495 = vrot.slane %v2462, %v2494
          %v2496 = vcombine.low %v2467, %v2471
          %v2497 = vcombine.low %v2475, %v2479
          %v2499 = vunpack.c.l.s4 1983009808
          %v2500 = vunpack.c.0.s8 %v2499
          %v2501 = vlaneseq
          %v2502 = vshrl.u32 %v2501, 7
          %v2503 = vsub.s32 %v2500, %v2502
          %v2504 = vrot.slane %v2496, %v2503
          %v2506 = vunpack.c.l.s4 1983009808
          %v2507 = vunpack.c.0.s8 %v2506
          %v2508 = vlaneseq
          %v2509 = vshrl.u32 %v2508, 7
          %v2510 = vsub.s32 %v2507, %v2509
          %v2511 = vrot.slane %v2497, %v2510
          %v2512 = vcombine.low %v2504, %v2511
          %v2513 = vcombine.low %v2483, %v2487
          %v2514 = vcombine.low %v2491, %v2495
          %v2516 = vunpack.c.l.s4 1983009808
          %v2517 = vunpack.c.0.s8 %v2516
          %v2518 = vlaneseq
          %v2519 = vshrl.u32 %v2518, 7
          %v2520 = vsub.s32 %v2517, %v2519
          %v2521 = vrot.slane %v2513, %v2520
          %v2523 = vunpack.c.l.s4 1983009808
          %v2524 = vunpack.c.0.s8 %v2523
          %v2525 = vlaneseq
          %v2526 = vshrl.u32 %v2525, 7
          %v2527 = vsub.s32 %v2524, %v2526
          %v2528 = vrot.slane %v2514, %v2527
          %v2529 = vcombine.low %v2521, %v2528
          %v2532 = vadd.f32 %v2460, %v2512
          %v2533 = vadd.f32 %v2461, %v2529
          %v2534 = vmax.f32 %v2532, 0.0
          %v2535 = vmax.f32 %v2533, 0.0
          %v2536 = vld [vmem:[%s3] sm:$0xff]
          %v2537 = vld [vmem:[%s3 + $0x8] sm:$0xff]
          %v2538 = vld [vmem:[%s3 + $0x10] sm:$0xff]
          %v2539 = vld [vmem:[%s3 + $0x18] sm:$0xff]
          %v2540 = vld [vmem:[%s3 + $0x20] sm:$0xff]
          %v2541 = vld [vmem:[%s3 + $0x28] sm:$0xff]
          %v2542 = vld [vmem:[%s3 + $0x30] sm:$0xff]
          %v2543 = vld [vmem:[%s3 + $0x38] sm:$0xff]
          %v2544 = vld [vmem:[%s3 + $0x40] sm:$0xff]
          %v2545 = vld [vmem:[%s3 + $0x48] sm:$0xff]
          %v2546 = vld [vmem:[%s3 + $0x50] sm:$0xff]
          %v2547 = vld [vmem:[%s3 + $0x58] sm:$0xff]
          %v2548 = vld [vmem:[%s3 + $0x60] sm:$0xff]
          %v2549 = vld [vmem:[%s3 + $0x68] sm:$0xff]
          %v2550 = vld [vmem:[%s3 + $0x70] sm:$0xff]
          %v2551 = vld [vmem:[%s3 + $0x78] sm:$0xff]
          %v2552 = vld [vmem:[%s3 + $0x80] sm:$0xff]
          %v2553 = vld [vmem:[%s3 + $0x88] sm:$0xff]
          %v2554 = vld [vmem:[%s3 + $0x90] sm:$0xff]
          %v2555 = vld [vmem:[%s3 + $0x98] sm:$0xff]
          %v2556 = vld [vmem:[%s3 + $0xa0] sm:$0xff]
          %v2557 = vld [vmem:[%s3 + $0xa8] sm:$0xff]
          %v2558 = vld [vmem:[%s3 + $0xb0] sm:$0xff]
          %v2559 = vld [vmem:[%s3 + $0xb8] sm:$0xff]
          %v2560 = vld [vmem:[%s3 + $0xc0] sm:$0xff]
          %v2561 = vld [vmem:[%s3 + $0xc8] sm:$0xff]
          %v2562 = vld [vmem:[%s3 + $0xd0] sm:$0xff]
          %v2563 = vld [vmem:[%s3 + $0xd8] sm:$0xff]
          %v2564 = vld [vmem:[%s3 + $0xe0] sm:$0xff]
          %v2565 = vld [vmem:[%s3 + $0xe8] sm:$0xff]
          %v2566 = vld [vmem:[%s3 + $0xf0] sm:$0xff]
          %v2567 = vld [vmem:[%s3 + $0xf8] sm:$0xff]
          %v2568 = vld [vmem:[%s3 + $0x100] sm:$0xff]
          %v2569 = vld [vmem:[%s3 + $0x108] sm:$0xff]
          %v2570 = vld [vmem:[%s3 + $0x110] sm:$0xff]
          %v2571 = vld [vmem:[%s3 + $0x118] sm:$0xff]
          %v2572 = vld [vmem:[%s3 + $0x120] sm:$0xff]
          %v2573 = vld [vmem:[%s3 + $0x128] sm:$0xff]
          %v2574 = vld [vmem:[%s3 + $0x130] sm:$0xff]
          %v2575 = vld [vmem:[%s3 + $0x138] sm:$0xff]
          %v2576 = vld [vmem:[%s3 + $0x140] sm:$0xff]
          %v2577 = vld [vmem:[%s3 + $0x148] sm:$0xff]
          %v2578 = vld [vmem:[%s3 + $0x150] sm:$0xff]
          %v2579 = vld [vmem:[%s3 + $0x158] sm:$0xff]
          %v2580 = vld [vmem:[%s3 + $0x160] sm:$0xff]
          %v2581 = vld [vmem:[%s3 + $0x168] sm:$0xff]
          %v2582 = vld [vmem:[%s3 + $0x170] sm:$0xff]
          %v2583 = vld [vmem:[%s3 + $0x178] sm:$0xff]
          %v2584 = vld [vmem:[%s3 + $0x180] sm:$0xff]
          %v2585 = vld [vmem:[%s3 + $0x188] sm:$0xff]
          %v2586 = vld [vmem:[%s3 + $0x190] sm:$0xff]
          %v2587 = vld [vmem:[%s3 + $0x198] sm:$0xff]
          %v2588 = vld [vmem:[%s3 + $0x1a0] sm:$0xff]
          %v2589 = vld [vmem:[%s3 + $0x1a8] sm:$0xff]
          %v2590 = vld [vmem:[%s3 + $0x1b0] sm:$0xff]
          %v2591 = vld [vmem:[%s3 + $0x1b8] sm:$0xff]
          %v2592 = vld [vmem:[%s3 + $0x1c0] sm:$0xff]
          %v2593 = vld [vmem:[%s3 + $0x1c8] sm:$0xff]
          %v2594 = vld [vmem:[%s3 + $0x1d0] sm:$0xff]
          %v2595 = vld [vmem:[%s3 + $0x1d8] sm:$0xff]
          %v2596 = vld [vmem:[%s3 + $0x1e0] sm:$0xff]
          %v2597 = vld [vmem:[%s3 + $0x1e8] sm:$0xff]
          %v2598 = vld [vmem:[%s3 + $0x1f0] sm:$0xff]
          %v2599 = vld [vmem:[%s3 + $0x1f8] sm:$0xff]
          %v2600 = vld [vmem:[%s3 + $0x200] sm:$0xff]
          %v2601 = vld [vmem:[%s3 + $0x208] sm:$0xff]
          %v2602 = vld [vmem:[%s3 + $0x210] sm:$0xff]
          %v2603 = vld [vmem:[%s3 + $0x218] sm:$0xff]
          %v2604 = vld [vmem:[%s3 + $0x220] sm:$0xff]
          %v2605 = vld [vmem:[%s3 + $0x228] sm:$0xff]
          %v2606 = vld [vmem:[%s3 + $0x230] sm:$0xff]
          %v2607 = vld [vmem:[%s3 + $0x238] sm:$0xff]
          %v2608 = vld [vmem:[%s3 + $0x240] sm:$0xff]
          %v2609 = vld [vmem:[%s3 + $0x248] sm:$0xff]
          %v2610 = vld [vmem:[%s3 + $0x250] sm:$0xff]
          %v2611 = vld [vmem:[%s3 + $0x258] sm:$0xff]
          %v2612 = vld [vmem:[%s3 + $0x260] sm:$0xff]
          %v2613 = vld [vmem:[%s3 + $0x268] sm:$0xff]
          %v2614 = vld [vmem:[%s3 + $0x270] sm:$0xff]
          %v2615 = vld [vmem:[%s3 + $0x278] sm:$0xff]
          %v2616 = vld [vmem:[%s3 + $0x280] sm:$0xff]
          %v2617 = vld [vmem:[%s3 + $0x288] sm:$0xff]
          %v2618 = vld [vmem:[%s3 + $0x290] sm:$0xff]
          %v2619 = vld [vmem:[%s3 + $0x298] sm:$0xff]
          %v2620 = vld [vmem:[%s3 + $0x2a0] sm:$0xff]
          %v2621 = vld [vmem:[%s3 + $0x2a8] sm:$0xff]
          %v2622 = vld [vmem:[%s3 + $0x2b0] sm:$0xff]
          %v2623 = vld [vmem:[%s3 + $0x2b8] sm:$0xff]
          %v2624 = vld [vmem:[%s3 + $0x2c0] sm:$0xff]
          %v2625 = vld [vmem:[%s3 + $0x2c8] sm:$0xff]
          %v2626 = vld [vmem:[%s3 + $0x2d0] sm:$0xff]
          %v2627 = vld [vmem:[%s3 + $0x2d8] sm:$0xff]
          %v2628 = vld [vmem:[%s3 + $0x2e0] sm:$0xff]
          %v2629 = vld [vmem:[%s3 + $0x2e8] sm:$0xff]
          %v2630 = vld [vmem:[%s3 + $0x2f0] sm:$0xff]
          %v2631 = vld [vmem:[%s3 + $0x2f8] sm:$0xff]
          %v2632 = vld [vmem:[%s3 + $0x300] sm:$0xff]
          %v2633 = vld [vmem:[%s3 + $0x308] sm:$0xff]
          %v2634 = vld [vmem:[%s3 + $0x310] sm:$0xff]
          %v2635 = vld [vmem:[%s3 + $0x318] sm:$0xff]
          %v2636 = vld [vmem:[%s3 + $0x320] sm:$0xff]
          %v2637 = vld [vmem:[%s3 + $0x328] sm:$0xff]
          %v2638 = vld [vmem:[%s3 + $0x330] sm:$0xff]
          %v2639 = vld [vmem:[%s3 + $0x338] sm:$0xff]
          %v2640 = vld [vmem:[%s3 + $0x340] sm:$0xff]
          %v2641 = vld [vmem:[%s3 + $0x348] sm:$0xff]
          %v2642 = vld [vmem:[%s3 + $0x350] sm:$0xff]
          %v2643 = vld [vmem:[%s3 + $0x358] sm:$0xff]
          %v2644 = vld [vmem:[%s3 + $0x360] sm:$0xff]
          %v2645 = vld [vmem:[%s3 + $0x368] sm:$0xff]
          %v2646 = vld [vmem:[%s3 + $0x370] sm:$0xff]
          %v2647 = vld [vmem:[%s3 + $0x378] sm:$0xff]
          %v2648 = vld [vmem:[%s3 + $0x380] sm:$0xff]
          %v2649 = vld [vmem:[%s3 + $0x388] sm:$0xff]
          %v2650 = vld [vmem:[%s3 + $0x390] sm:$0xff]
          %v2651 = vld [vmem:[%s3 + $0x398] sm:$0xff]
          %v2652 = vld [vmem:[%s3 + $0x3a0] sm:$0xff]
          %v2653 = vld [vmem:[%s3 + $0x3a8] sm:$0xff]
          %v2654 = vld [vmem:[%s3 + $0x3b0] sm:$0xff]
          %v2655 = vld [vmem:[%s3 + $0x3b8] sm:$0xff]
          %v2656 = vld [vmem:[%s3 + $0x3c0] sm:$0xff]
          %v2657 = vld [vmem:[%s3 + $0x3c8] sm:$0xff]
          %v2658 = vld [vmem:[%s3 + $0x3d0] sm:$0xff]
          %v2659 = vld [vmem:[%s3 + $0x3d8] sm:$0xff]
          %v2660 = vld [vmem:[%s3 + $0x3e0] sm:$0xff]
          %v2661 = vld [vmem:[%s3 + $0x3e8] sm:$0xff]
          %v2662 = vld [vmem:[%s3 + $0x3f0] sm:$0xff]
          %v2663 = vld [vmem:[%s3 + $0x3f8] sm:$0xff]
          %v2664 = vld [vmem:[#allocation9] sm:$0x1]
          %v2666 = vlaneseq
          %v2667 = vshrl.u32 %v2666, 7
          %v2668 = vsub.s32 0, %v2667
          %v2669 = vrot.slane %v2664, %v2668
          %v2673 = vcombine.high %v2534, %v2534
          %v2675 = vunpack.c.l.s4 1983009808
          %v2676 = vunpack.c.0.s8 %v2675
          %v2677 = vlaneseq
          %v2678 = vshrl.u32 %v2677, 7
          %v2679 = vsub.s32 %v2676, %v2678
          %v2680 = vrot.slane %v2534, %v2679
          %v2682 = vunpack.c.l.s4 1983009808
          %v2683 = vunpack.c.0.s8 %v2682
          %v2684 = vlaneseq
          %v2685 = vshrl.u32 %v2684, 7
          %v2686 = vsub.s32 %v2683, %v2685
          %v2687 = vrot.slane %v2673, %v2686
          %v2688 = vcombine.high %v2680, %v2680
          %v2689 = vcombine.high %v2687, %v2687
          %v2690 = vcombine.high %v2535, %v2535
          %v2692 = vunpack.c.l.s4 1983009808
          %v2693 = vunpack.c.0.s8 %v2692
          %v2694 = vlaneseq
          %v2695 = vshrl.u32 %v2694, 7
          %v2696 = vsub.s32 %v2693, %v2695
          %v2697 = vrot.slane %v2535, %v2696
          %v2699 = vunpack.c.l.s4 1983009808
          %v2700 = vunpack.c.0.s8 %v2699
          %v2701 = vlaneseq
          %v2702 = vshrl.u32 %v2701, 7
          %v2703 = vsub.s32 %v2700, %v2702
          %v2704 = vrot.slane %v2690, %v2703
          %v2705 = vcombine.high %v2697, %v2697
          %v2706 = vcombine.high %v2704, %v2704
          %2715 = vmatprep.subr.mxu0 0.0
          %2716 = vmatpush1.msra.mxu0 %v2551
          %2717 = vmatprep.subr.mxu0 0.0
          %2718 = vmatpush1.msra.mxu0 %v2550
          %2719 = vmatprep.subr.mxu0 0.0
          %2720 = vmatpush1.msra.mxu0 %v2549
          %2721 = vmatprep.subr.mxu0 0.0
          %2722 = vmatpush1.msra.mxu0 %v2548
          %2723 = vmatprep.subr.mxu0 0.0
          %2724 = vmatpush1.msra.mxu0 %v2547
          %2725 = vmatprep.subr.mxu0 0.0
          %2726 = vmatpush1.msra.mxu0 %v2546
          %2727 = vmatprep.subr.mxu0 0.0
          %2728 = vmatpush1.msra.mxu0 %v2545
          %2729 = vmatprep.subr.mxu0 0.0
          %2730 = vmatpush1.msra.mxu0 %v2544
          %2731 = vmatprep.subr.mxu0 0.0
          %2732 = vmatpush1.msra.mxu0 %v2543
          %2733 = vmatprep.subr.mxu0 0.0
          %2734 = vmatpush1.msra.mxu0 %v2542
          %2735 = vmatprep.subr.mxu0 0.0
          %2736 = vmatpush1.msra.mxu0 %v2541
          %2737 = vmatprep.subr.mxu0 0.0
          %2738 = vmatpush1.msra.mxu0 %v2540
          %2739 = vmatprep.subr.mxu0 0.0
          %2740 = vmatpush1.msra.mxu0 %v2539
          %2741 = vmatprep.subr.mxu0 0.0
          %2742 = vmatpush1.msra.mxu0 %v2538
          %2743 = vmatprep.subr.mxu0 0.0
          %2744 = vmatpush1.msra.mxu0 %v2537
          %2745 = vmatprep.subr.mxu0 0.0
          %2746 = vmatpush1.msra.mxu0 %v2536
          %2747 = vmatprep.subr.mxu0 0.0
          %2748 = vmatpush2.msra.mxu0 %v2567
          %2749 = vmatprep.subr.mxu0 0.0
          %2750 = vmatpush2.msra.mxu0 %v2566
          %2751 = vmatprep.subr.mxu0 0.0
          %2752 = vmatpush2.msra.mxu0 %v2565
          %2753 = vmatprep.subr.mxu0 0.0
          %2754 = vmatpush2.msra.mxu0 %v2564
          %2755 = vmatprep.subr.mxu0 0.0
          %2756 = vmatpush2.msra.mxu0 %v2563
          %2757 = vmatprep.subr.mxu0 0.0
          %2758 = vmatpush2.msra.mxu0 %v2562
          %2759 = vmatprep.subr.mxu0 0.0
          %2760 = vmatpush2.msra.mxu0 %v2561
          %2761 = vmatprep.subr.mxu0 0.0
          %2762 = vmatpush2.msra.mxu0 %v2560
          %2763 = vmatprep.subr.mxu0 0.0
          %2764 = vmatpush2.msra.mxu0 %v2559
          %2765 = vmatprep.subr.mxu0 0.0
          %2766 = vmatpush2.msra.mxu0 %v2558
          %2767 = vmatprep.subr.mxu0 0.0
          %2768 = vmatpush2.msra.mxu0 %v2557
          %2769 = vmatprep.subr.mxu0 0.0
          %2770 = vmatpush2.msra.mxu0 %v2556
          %2771 = vmatprep.subr.mxu0 0.0
          %2772 = vmatpush2.msra.mxu0 %v2555
          %2773 = vmatprep.subr.mxu0 0.0
          %2774 = vmatpush2.msra.mxu0 %v2554
          %2775 = vmatprep.subr.mxu0 0.0
          %2776 = vmatpush2.msra.mxu0 %v2553
          %2777 = vmatprep.subr.mxu0 0.0
          %2778 = vmatpush2.msra.mxu0 %v2552
          %2779 = vmatprep.mubr.f32.mxu0 %v2688
          %2780 = vmatmul.mubr.f32.gmra.mxu0 %v2680
          %v2781 = vpop.f32.mrf.mxu0
          %v2782 = vadd.f32 %v2669, %v2781
          %v2783 = vpop.f32.mrf.mxu0
          %2784 = vdwg.mxu0
          %2785 = vmatprep.subr.mxu0 0.0
          %2786 = vmatpush1.msra.mxu0 %v2583
          %2787 = vmatprep.subr.mxu0 0.0
          %2788 = vmatpush1.msra.mxu0 %v2582
          %2789 = vmatprep.subr.mxu0 0.0
          %2790 = vmatpush1.msra.mxu0 %v2581
          %2791 = vmatprep.subr.mxu0 0.0
          %2792 = vmatpush1.msra.mxu0 %v2580
          %2793 = vmatprep.subr.mxu0 0.0
          %2794 = vmatpush1.msra.mxu0 %v2579
          %2795 = vmatprep.subr.mxu0 0.0
          %2796 = vmatpush1.msra.mxu0 %v2578
          %2797 = vmatprep.subr.mxu0 0.0
          %2798 = vmatpush1.msra.mxu0 %v2577
          %2799 = vmatprep.subr.mxu0 0.0
          %2800 = vmatpush1.msra.mxu0 %v2576
          %2801 = vmatprep.subr.mxu0 0.0
          %2802 = vmatpush1.msra.mxu0 %v2575
          %2803 = vmatprep.subr.mxu0 0.0
          %2804 = vmatpush1.msra.mxu0 %v2574
          %2805 = vmatprep.subr.mxu0 0.0
          %2806 = vmatpush1.msra.mxu0 %v2573
          %2807 = vmatprep.subr.mxu0 0.0
          %2808 = vmatpush1.msra.mxu0 %v2572
          %2809 = vmatprep.subr.mxu0 0.0
          %2810 = vmatpush1.msra.mxu0 %v2571
          %2811 = vmatprep.subr.mxu0 0.0
          %2812 = vmatpush1.msra.mxu0 %v2570
          %2813 = vmatprep.subr.mxu0 0.0
          %2814 = vmatpush1.msra.mxu0 %v2569
          %2815 = vmatprep.subr.mxu0 0.0
          %2816 = vmatpush1.msra.mxu0 %v2568
          %2817 = vmatprep.subr.mxu0 0.0
          %2818 = vmatpush2.msra.mxu0 %v2599
          %2819 = vmatprep.subr.mxu0 0.0
          %2820 = vmatpush2.msra.mxu0 %v2598
          %2821 = vmatprep.subr.mxu0 0.0
          %2822 = vmatpush2.msra.mxu0 %v2597
          %2823 = vmatprep.subr.mxu0 0.0
          %2824 = vmatpush2.msra.mxu0 %v2596
          %2825 = vmatprep.subr.mxu0 0.0
          %2826 = vmatpush2.msra.mxu0 %v2595
          %2827 = vmatprep.subr.mxu0 0.0
          %2828 = vmatpush2.msra.mxu0 %v2594
          %2829 = vmatprep.subr.mxu0 0.0
          %2830 = vmatpush2.msra.mxu0 %v2593
          %2831 = vmatprep.subr.mxu0 0.0
          %2832 = vmatpush2.msra.mxu0 %v2592
          %2833 = vmatprep.subr.mxu0 0.0
          %2834 = vmatpush2.msra.mxu0 %v2591
          %2835 = vmatprep.subr.mxu0 0.0
          %2836 = vmatpush2.msra.mxu0 %v2590
          %2837 = vmatprep.subr.mxu0 0.0
          %2838 = vmatpush2.msra.mxu0 %v2589
          %2839 = vmatprep.subr.mxu0 0.0
          %2840 = vmatpush2.msra.mxu0 %v2588
          %2841 = vmatprep.subr.mxu0 0.0
          %2842 = vmatpush2.msra.mxu0 %v2587
          %2843 = vmatprep.subr.mxu0 0.0
          %2844 = vmatpush2.msra.mxu0 %v2586
          %2845 = vmatprep.subr.mxu0 0.0
          %2846 = vmatpush2.msra.mxu0 %v2585
          %2847 = vmatprep.subr.mxu0 0.0
          %2848 = vmatpush2.msra.mxu0 %v2584
          %2849 = vmatprep.mubr.f32.mxu0 %v2689
          %2850 = vmatmul.mubr.f32.gmra.mxu0 %v2687
          %v2851 = vpop.f32.mrf.mxu0
          %v2852 = vadd.f32 %v2782, %v2851
          %v2853 = vpop.f32.mrf.mxu0
          %2854 = vdwg.mxu0
          %2855 = vmatprep.subr.mxu0 0.0
          %2856 = vmatpush1.msra.mxu0 %v2615
          %2857 = vmatprep.subr.mxu0 0.0
          %2858 = vmatpush1.msra.mxu0 %v2614
          %2859 = vmatprep.subr.mxu0 0.0
          %2860 = vmatpush1.msra.mxu0 %v2613
          %2861 = vmatprep.subr.mxu0 0.0
          %2862 = vmatpush1.msra.mxu0 %v2612
          %2863 = vmatprep.subr.mxu0 0.0
          %2864 = vmatpush1.msra.mxu0 %v2611
          %2865 = vmatprep.subr.mxu0 0.0
          %2866 = vmatpush1.msra.mxu0 %v2610
          %2867 = vmatprep.subr.mxu0 0.0
          %2868 = vmatpush1.msra.mxu0 %v2609
          %2869 = vmatprep.subr.mxu0 0.0
          %2870 = vmatpush1.msra.mxu0 %v2608
          %2871 = vmatprep.subr.mxu0 0.0
          %2872 = vmatpush1.msra.mxu0 %v2607
          %2873 = vmatprep.subr.mxu0 0.0
          %2874 = vmatpush1.msra.mxu0 %v2606
          %2875 = vmatprep.subr.mxu0 0.0
          %2876 = vmatpush1.msra.mxu0 %v2605
          %2877 = vmatprep.subr.mxu0 0.0
          %2878 = vmatpush1.msra.mxu0 %v2604
          %2879 = vmatprep.subr.mxu0 0.0
          %2880 = vmatpush1.msra.mxu0 %v2603
          %2881 = vmatprep.subr.mxu0 0.0
          %2882 = vmatpush1.msra.mxu0 %v2602
          %2883 = vmatprep.subr.mxu0 0.0
          %2884 = vmatpush1.msra.mxu0 %v2601
          %2885 = vmatprep.subr.mxu0 0.0
          %2886 = vmatpush1.msra.mxu0 %v2600
          %2887 = vmatprep.subr.mxu0 0.0
          %2888 = vmatpush2.msra.mxu0 %v2631
          %2889 = vmatprep.subr.mxu0 0.0
          %2890 = vmatpush2.msra.mxu0 %v2630
          %2891 = vmatprep.subr.mxu0 0.0
          %2892 = vmatpush2.msra.mxu0 %v2629
          %2893 = vmatprep.subr.mxu0 0.0
          %2894 = vmatpush2.msra.mxu0 %v2628
          %2895 = vmatprep.subr.mxu0 0.0
          %2896 = vmatpush2.msra.mxu0 %v2627
          %2897 = vmatprep.subr.mxu0 0.0
          %2898 = vmatpush2.msra.mxu0 %v2626
          %2899 = vmatprep.subr.mxu0 0.0
          %2900 = vmatpush2.msra.mxu0 %v2625
          %2901 = vmatprep.subr.mxu0 0.0
          %2902 = vmatpush2.msra.mxu0 %v2624
          %2903 = vmatprep.subr.mxu0 0.0
          %2904 = vmatpush2.msra.mxu0 %v2623
          %2905 = vmatprep.subr.mxu0 0.0
          %2906 = vmatpush2.msra.mxu0 %v2622
          %2907 = vmatprep.subr.mxu0 0.0
          %2908 = vmatpush2.msra.mxu0 %v2621
          %2909 = vmatprep.subr.mxu0 0.0
          %2910 = vmatpush2.msra.mxu0 %v2620
          %2911 = vmatprep.subr.mxu0 0.0
          %2912 = vmatpush2.msra.mxu0 %v2619
          %2913 = vmatprep.subr.mxu0 0.0
          %2914 = vmatpush2.msra.mxu0 %v2618
          %2915 = vmatprep.subr.mxu0 0.0
          %2916 = vmatpush2.msra.mxu0 %v2617
          %2917 = vmatprep.subr.mxu0 0.0
          %2918 = vmatpush2.msra.mxu0 %v2616
          %2919 = vmatprep.mubr.f32.mxu0 %v2705
          %2920 = vmatmul.mubr.f32.gmra.mxu0 %v2697
          %v2921 = vpop.f32.mrf.mxu0
          %v2922 = vadd.f32 %v2852, %v2921
          %v2923 = vpop.f32.mrf.mxu0
          %2924 = vdwg.mxu0
          %2925 = vmatprep.subr.mxu0 0.0
          %2926 = vmatpush1.msra.mxu0 %v2647
          %2927 = vmatprep.subr.mxu0 0.0
          %2928 = vmatpush1.msra.mxu0 %v2646
          %2929 = vmatprep.subr.mxu0 0.0
          %2930 = vmatpush1.msra.mxu0 %v2645
          %2931 = vmatprep.subr.mxu0 0.0
          %2932 = vmatpush1.msra.mxu0 %v2644
          %2933 = vmatprep.subr.mxu0 0.0
          %2934 = vmatpush1.msra.mxu0 %v2643
          %2935 = vmatprep.subr.mxu0 0.0
          %2936 = vmatpush1.msra.mxu0 %v2642
          %2937 = vmatprep.subr.mxu0 0.0
          %2938 = vmatpush1.msra.mxu0 %v2641
          %2939 = vmatprep.subr.mxu0 0.0
          %2940 = vmatpush1.msra.mxu0 %v2640
          %2941 = vmatprep.subr.mxu0 0.0
          %2942 = vmatpush1.msra.mxu0 %v2639
          %2943 = vmatprep.subr.mxu0 0.0
          %2944 = vmatpush1.msra.mxu0 %v2638
          %2945 = vmatprep.subr.mxu0 0.0
          %2946 = vmatpush1.msra.mxu0 %v2637
          %2947 = vmatprep.subr.mxu0 0.0
          %2948 = vmatpush1.msra.mxu0 %v2636
          %2949 = vmatprep.subr.mxu0 0.0
          %2950 = vmatpush1.msra.mxu0 %v2635
          %2951 = vmatprep.subr.mxu0 0.0
          %2952 = vmatpush1.msra.mxu0 %v2634
          %2953 = vmatprep.subr.mxu0 0.0
          %2954 = vmatpush1.msra.mxu0 %v2633
          %2955 = vmatprep.subr.mxu0 0.0
          %2956 = vmatpush1.msra.mxu0 %v2632
          %2957 = vmatprep.subr.mxu0 0.0
          %2958 = vmatpush2.msra.mxu0 %v2663
          %2959 = vmatprep.subr.mxu0 0.0
          %2960 = vmatpush2.msra.mxu0 %v2662
          %2961 = vmatprep.subr.mxu0 0.0
          %2962 = vmatpush2.msra.mxu0 %v2661
          %2963 = vmatprep.subr.mxu0 0.0
          %2964 = vmatpush2.msra.mxu0 %v2660
          %2965 = vmatprep.subr.mxu0 0.0
          %2966 = vmatpush2.msra.mxu0 %v2659
          %2967 = vmatprep.subr.mxu0 0.0
          %2968 = vmatpush2.msra.mxu0 %v2658
          %2969 = vmatprep.subr.mxu0 0.0
          %2970 = vmatpush2.msra.mxu0 %v2657
          %2971 = vmatprep.subr.mxu0 0.0
          %2972 = vmatpush2.msra.mxu0 %v2656
          %2973 = vmatprep.subr.mxu0 0.0
          %2974 = vmatpush2.msra.mxu0 %v2655
          %2975 = vmatprep.subr.mxu0 0.0
          %2976 = vmatpush2.msra.mxu0 %v2654
          %2977 = vmatprep.subr.mxu0 0.0
          %2978 = vmatpush2.msra.mxu0 %v2653
          %2979 = vmatprep.subr.mxu0 0.0
          %2980 = vmatpush2.msra.mxu0 %v2652
          %2981 = vmatprep.subr.mxu0 0.0
          %2982 = vmatpush2.msra.mxu0 %v2651
          %2983 = vmatprep.subr.mxu0 0.0
          %2984 = vmatpush2.msra.mxu0 %v2650
          %2985 = vmatprep.subr.mxu0 0.0
          %2986 = vmatpush2.msra.mxu0 %v2649
          %2987 = vmatprep.subr.mxu0 0.0
          %2988 = vmatpush2.msra.mxu0 %v2648
          %2989 = vmatprep.mubr.f32.mxu0 %v2706
          %2990 = vmatmul.mubr.f32.gmra.mxu0 %v2704
          %v2991 = vpop.f32.mrf.mxu0
          %v2992 = vadd.f32 %v2922, %v2991
          %v2993 = vpop.f32.mrf.mxu0
          %2994 = vdwg.mxu0
          %vm2995 = vcmask 410624
          %2996 = vst.msk [vmem:[#allocation11] sm:$0x3] %vm2995, %v2992
        $region64: #{tpu_custom_call.1} parent=39 // pred_fallthru
          _
        // Predicated region
        $region65: #{tpu_custom_call.1} parent=39 // pred_check
          %p2997 = pneg %p152
        $region66: #{tpu_custom_call.1} parent=39 // pred_check_branch
          %2999 = sbr.rel (%p2997) target = $region68
        $region67: #{tpu_custom_call.1} parent=39 // pred_region
          %s3001 = ssub.s32 32, 32
          %3002 = vsyncadd [#allocation5], %s3001
          %s3004 = sshll.u32 [#allocation11], 4
          %s3005 = int_to_ptr.vmem [resolvable:$true] %s3004
          %3007 = dma.vmem_to_hbm [thread:$0]  %s3005, 32, %s5, [#allocation5]
        $region68: #{tpu_custom_call.1} parent=39 // pred_fallthru
          _
        // Predicated region
        $region69: #{tpu_custom_call.1} parent=39 // pred_check
          %p3008 = pneg %p152
        $region70: #{tpu_custom_call.1} parent=39 // pred_check_branch
          %3010 = sbr.rel (%p3008) target = $region72
        $region71: #{tpu_custom_call.1} parent=39 // pred_region
          %3011 = dma.done [#allocation5], 32
        $region72: #{tpu_custom_call.1} parent=39 // pred_fallthru
          _
      $region40: #{tpu_custom_call.1} parent=5 // pred_fallthru
        _
      %p3012 = scmp.le.s32.totalorder 2, %s19
      // Predicated region
      $region73: #{tpu_custom_call.1} parent=5 // pred_check
        %p3013 = pneg %p3012
      $region74: #{tpu_custom_call.1} parent=5 // pred_check_branch
        %3015 = sbr.rel (%p3013) target = $region76
      $region75: #{tpu_custom_call.1} parent=5 // pred_region
        %s3016 = ssub.s32 %s19, 2
      $region76: #{tpu_custom_call.1} parent=5 // pred_fallthru
        _
    $region6: #{tpu_custom_call.1} parent=1 // loop_footer
      %s23 = sadd.s32 1, %s19
    $region7: #{tpu_custom_call.1} parent=1 // loop_footer_branch
      %18 = sbr.rel target = $region3
    $region8: #{tpu_custom_call.1} parent=1 // loop_exit
      _
    %3017 = vsyncpa [#allocation4], 1
    %s3018 = scalar_lea.sflag [#allocation4], 1
    %3019 = vsyncpa %s3018, 1
    %3020 = vsyncpa [#allocation7], 1
    %s3021 = scalar_lea.sflag [#allocation7], 1
    %3022 = vsyncpa %s3021, 1
    %3023 = vsyncpa [#allocation10], 1
    %3024 = vsyncpa [#allocation5], 1
    %s3025 = scalar_lea.sflag [#allocation5], 1
    %3026 = vsyncpa %s3025, 1

</llo_original>
